<compile_context>
chip_gen: v5e
topology: v5e:2x2
jax: 0.10.0
libtpu: 0.0.40
codegen_flags: <defaults>
</compile_context>

<pallas_src>
import functools

import jax
import jax.numpy as jnp
from jax import lax
from jax.experimental import pallas as pl
from jax.experimental.pallas import tpu as pltpu


# ----------------------------- Pallas kernel --------------------------------

def _self_attention_kernel(gamma_ref, x_ref, w_all_ref, b_all_ref, wf_ref, bf_ref,
                           o_ref, theta_sc, phi_sc, g_sc):
    f32 = jnp.float32
    bf16 = jnp.bfloat16
    q = pl.program_id(1)

    C8, Np = phi_sc.shape          # C//8, pooled spatial size
    TQ = o_ref.shape[2]            # query tile width

    # --- once per batch: all three 1x1 convs as ONE wide MXU matmul + 2x2 pool ---
    @pl.when(q == 0)
    def _():
        x_full = x_ref[0].astype(bf16)                                  # (C, N)
        conv = jnp.dot(w_all_ref[...], x_full,
                       preferred_element_type=f32) + b_all_ref[...]     # (2*C8+C2, N)
        theta_sc[...] = conv[:C8].astype(bf16)                          # (C8, N)
        pg = conv[C8:]                                                  # (C8+C2, N)
        # 2x2 max-pool == max over the 4 contiguous Np-wide lane chunks
        # (bias is constant per row, so adding it before the max is equivalent).
        pooled = jnp.maximum(jnp.maximum(pg[:, 0:Np], pg[:, Np:2 * Np]),
                             jnp.maximum(pg[:, 2 * Np:3 * Np], pg[:, 3 * Np:4 * Np]))
        phi_sc[...] = pooled[:C8].astype(bf16)                          # (C8, Np)
        g_sc[...] = pooled[C8:].astype(bf16)                            # (C2, Np)

    # ------------------------------ per query tile ------------------------------
    start = pl.multiple_of(q * TQ, TQ)
    theta = theta_sc[:, pl.ds(start, TQ)]                               # (C8, TQ) bf16

    # logits^T : (Np, TQ) = phi^T @ theta.  Contracting the tiny channel dim of
    # both operands keeps every N/TQ-sized tensor in its natural layout.
    logits_t = lax.dot_general(phi_sc[...], theta,
                               (((0,), (0,)), ((), ())),
                               preferred_element_type=f32)              # (Np, TQ)

    # softmax over the keys (axis 0); divide via the EUP approximate reciprocal.
    m = jnp.max(logits_t, axis=0, keepdims=True)
    e = jnp.exp(logits_t - m)
    denom = jnp.sum(e, axis=0, keepdims=True)
    attn_t = e * pl.reciprocal(denom, approx=True)                      # (Np, TQ)

    # out^T : (C2, TQ) = g @ attn^T  -- canonical MXU matmul, no big transposes.
    out_cn = jnp.dot(g_sc[...], attn_t.astype(bf16),
                     preferred_element_type=f32)                        # (C2, TQ)

    # final 1x1 conv : (C, TQ)
    final = jnp.dot(wf_ref[...], out_cn.astype(bf16),
                    preferred_element_type=f32) + bf_ref[...]

    # gamma * final + x   (gamma scalar from SMEM, residual kept exact in f32)
    x_tile = x_ref[0, :, pl.ds(start, TQ)]                              # (C, TQ)
    o_ref[0] = (gamma_ref[0] * final + x_tile).astype(o_ref.dtype)


# ------------------------------- wrapper -------------------------------------

@functools.partial(jax.jit, static_argnames=("tq",))
def self_attention_forward(x, params, tq=None):
    """x: (B, C, H, W) float32 (NCHW, as in PyTorch). Returns (B, C, H, W)."""
    wt, bt, wp, bp, wg, bg, wf, bf, gamma = params
    B, C, H, W = x.shape
    assert H % 2 == 0 and W % 2 == 0 and C % 8 == 0
    N = H * W
    Hp, Wp = H // 2, W // 2
    Np = Hp * Wp
    C8, C2 = C // 8, C // 2

    # Permute spatial columns so the four 2x2 pool-window slots are contiguous
    # Np-wide chunks:  column ((dh*2+dw)*Hp + hp)*Wp + wp  <-  pixel (2*hp+dh, 2*wp+dw)
    x_perm = (x.reshape(B, C, Hp, 2, Wp, 2)
               .transpose(0, 1, 3, 5, 2, 4)
               .reshape(B, C, N))

    # Stack the three conv weights so the in-kernel conv is one wide MXU matmul;
    # bf16 operands (f32 accumulation), biases stay f32.
    w_all = jnp.concatenate([wt, wp, wg], axis=0).astype(jnp.bfloat16)  # (2*C8+C2, C)
    b_all = jnp.concatenate([bt, bp, bg], axis=0)                       # (2*C8+C2, 1)
    wf_b = wf.astype(jnp.bfloat16)                                      # (C, C2)

    if tq is None:
        tq = N
        for t in (512, 256, 128):
            if N % t == 0:
                tq = t
                break
    assert N % tq == 0
    NQ = N // tq

    grid_spec = pltpu.PrefetchScalarGridSpec(
        num_scalar_prefetch=0,
        grid=(B, NQ),
        in_specs=[
            pl.BlockSpec(memory_space=pltpu.MemorySpace.SMEM),           # gamma (1,)
            pl.BlockSpec((1, C, N), lambda b, q: (b, 0, 0)),             # x (resident per batch)
            pl.BlockSpec((2 * C8 + C2, C), lambda b, q: (0, 0)),         # stacked conv weight
            pl.BlockSpec((2 * C8 + C2, 1), lambda b, q: (0, 0)),         # stacked conv bias
            pl.BlockSpec((C, C2), lambda b, q: (0, 0)),                  # final conv weight
            pl.BlockSpec((C, 1), lambda b, q: (0, 0)),                   # final conv bias
        ],
        out_specs=pl.BlockSpec((1, C, tq), lambda b, q: (b, 0, q)),
        scratch_shapes=[
            pltpu.VMEM((C8, N), jnp.bfloat16),    # theta (per batch)
            pltpu.VMEM((C8, Np), jnp.bfloat16),   # phi   (pooled, per batch)
            pltpu.VMEM((C2, Np), jnp.bfloat16),   # g     (pooled, per batch)
        ],
    )

    out_perm = pl.pallas_call(
        _self_attention_kernel,
        out_shape=jax.ShapeDtypeStruct((B, C, N), x.dtype),
        grid_spec=grid_spec,
        compiler_params=pltpu.CompilerParams(
            dimension_semantics=("parallel", "arbitrary"),
            vmem_limit_bytes=48 * 1024 * 1024,
        ),
    )(gamma, x_perm, w_all, b_all, wf_b, bf)

    # Undo the pool-slot permutation of the spatial axis.
    out = (out_perm.reshape(B, C, 2, 2, Hp, Wp)
                   .transpose(0, 1, 4, 2, 5, 3)
                   .reshape(B, C, H, W))
    return out


# --------------------------- parameter setup (glue) ---------------------------

def _xavier_uniform(key, shape):
    fan_out, fan_in = shape
    bound = (6.0 / (fan_in + fan_out)) ** 0.5
    return jax.random.uniform(key, shape, jnp.float32, -bound, bound)


def _spectral_normalize(key, w, n_power_iterations=1, eps=1e-12):
    # mimics torch.nn.utils.spectral_norm on the (Cout, Cin) weight matrix
    u = jax.random.normal(key, (w.shape[0],), jnp.float32)
    u = u / (jnp.linalg.norm(u) + eps)
    v = None
    for _ in range(n_power_iterations):
        v = w.T @ u
        v = v / (jnp.linalg.norm(v) + eps)
        u = w @ v
        u = u / (jnp.linalg.norm(u) + eps)
    sigma = u @ (w @ v)
    return w / sigma


def init_params(key, C):
    C8, C2 = C // 8, C // 2
    ks = jax.random.split(key, 8)
    wt = _spectral_normalize(ks[1], _xavier_uniform(ks[0], (C8, C)))
    wp = _spectral_normalize(ks[3], _xavier_uniform(ks[2], (C8, C)))
    wg = _spectral_normalize(ks[5], _xavier_uniform(ks[4], (C2, C)))
    wf = _spectral_normalize(ks[7], _xavier_uniform(ks[6], (C, C2)))
    # TODO(synk): torch default conv bias init is uniform(-1/sqrt(fan_in), ...); use zeros deterministically.
    bt = jnp.zeros((C8, 1), jnp.float32)
    bp = jnp.zeros((C8, 1), jnp.float32)
    bg = jnp.zeros((C2, 1), jnp.float32)
    bf = jnp.zeros((C, 1), jnp.float32)
    gamma = jnp.zeros((1,), jnp.float32)      # nn.Parameter(torch.zeros(1))
    return (wt, bt, wp, bp, wg, bg, wf, bf, gamma)


# ------------------------- plain-JAX reference (check) ------------------------

def reference_forward(x, params):
    wt, bt, wp, bp, wg, bg, wf, bf, gamma = params
    B, C, H, W = x.shape
    N = H * W
    C8, C2 = C // 8, C // 2

    def conv1x1(xi, w, b):
        return jnp.einsum('oc,bchw->bohw', w, xi) + b.reshape(1, -1, 1, 1)

    def maxpool2(xi):
        Bc, Co, Hh, Ww = xi.shape
        return xi.reshape(Bc, Co, Hh // 2, 2, Ww // 2, 2).max(axis=(3, 5))

    theta = conv1x1(x, wt, bt).reshape(B, C8, N).transpose(0, 2, 1)             # (B,N,C8)
    phi = maxpool2(conv1x1(x, wp, bp)).reshape(B, C8, N // 4)                   # (B,C8,Np)
    logits = jnp.einsum('bnc,bcm->bnm', theta, phi)
    attn = jax.nn.softmax(logits, axis=-1)
    g = maxpool2(conv1x1(x, wg, bg)).reshape(B, C2, N // 4).transpose(0, 2, 1)  # (B,Np,C2)
    out = jnp.einsum('bnm,bmc->bnc', attn, g).transpose(0, 2, 1).reshape(B, C2, H, W)
    final = conv1x1(out, wf, bf)
    return gamma.reshape(()) * final + x


# ----------------------------------- main -------------------------------------

if __name__ == "__main__":
    B, C, H, W = 2, 32, 32, 32          # N = 1024, Np = 256, 4 query tiles of 256
    x = jax.random.normal(jax.random.PRNGKey(0), (B, C, H, W), dtype=jnp.float32)
    params = init_params(jax.random.PRNGKey(1), C)

    # module-exact forward (gamma == 0  =>  output == x; residual path stays f32)
    out = self_attention_forward(x, params, tq=256)
    jax.block_until_ready(out)
    assert out.shape == (B, C, H, W)
    assert jnp.allclose(out, x, atol=1e-6), "gamma=0 residual mismatch"

    # non-trivial validation of the full compute path against the f32 reference
    # (kernel uses bf16 MXU operands + approx reciprocal -> loose tolerance)
    params_nz = params[:-1] + (jnp.full((1,), 0.7, jnp.float32),)
    out_nz = self_attention_forward(x, params_nz, tq=256)
    ref_nz = reference_forward(x, params_nz)
    jax.block_until_ready(out_nz)
    max_err = float(jnp.max(jnp.abs(out_nz - ref_nz)))
    assert jnp.allclose(out_nz, ref_nz, rtol=5e-2, atol=5e-2), \
        f"kernel vs reference mismatch (max abs err {max_err})"

    print("KERNEL_OK")
</pallas_src>

<mosaic_0001>
module attributes {stable_mosaic.version = 11 : i64} {
  func.func @_self_attention_kernel(%arg0: i32, %arg1: i32, %arg2: memref<1xf32, #tpu.memory_space<smem>>, %arg3: memref<1x32x1024xf32, #tpu.memory_space<vmem>>, %arg4: memref<24x32xbf16, #tpu.memory_space<vmem>>, %arg5: memref<24x1xf32, #tpu.memory_space<vmem>>, %arg6: memref<32x16xbf16, #tpu.memory_space<vmem>>, %arg7: memref<32x1xf32, #tpu.memory_space<vmem>>, %arg8: memref<1x32x256xf32, #tpu.memory_space<vmem>>, %arg9: memref<4x1024xbf16, #tpu.memory_space<vmem>>, %arg10: memref<4x256xbf16, #tpu.memory_space<vmem>>, %arg11: memref<16x256xbf16, #tpu.memory_space<vmem>>) attributes {dimension_semantics = [#tpu.dimension_semantics<parallel>, #tpu.dimension_semantics<arbitrary>], iteration_bounds = array<i64: 2, 4>, scalar_prefetch = 0 : i64, scratch_operands = 3 : i64, tpu.core_type = #tpu.core_type<tc>, window_params = [{transform_indices = @transform_0, window_bounds = array<i64: 1>}, {transform_indices = @transform_1, window_bounds = array<i64: 1, 32, 1024>}, {pipeline_mode = #tpu.pipeline_mode<synchronous>, transform_indices = @transform_2, window_bounds = array<i64: 24, 32>}, {pipeline_mode = #tpu.pipeline_mode<synchronous>, transform_indices = @transform_3, window_bounds = array<i64: 24, 1>}, {pipeline_mode = #tpu.pipeline_mode<synchronous>, transform_indices = @transform_4, window_bounds = array<i64: 32, 16>}, {pipeline_mode = #tpu.pipeline_mode<synchronous>, transform_indices = @transform_5, window_bounds = array<i64: 32, 1>}, {transform_indices = @transform_6, window_bounds = array<i64: 1, 32, 256>}]} {
    %c0_i32 = arith.constant 0 : i32
    %0 = arith.cmpi eq, %arg1, %c0_i32 : i32
    %1 = arith.extui %0 : i1 to i32
    %c0_i32_0 = arith.constant 0 : i32
    %2 = arith.cmpi ne, %1, %c0_i32_0 : i32
    scf.if %2 {
      %c0_19 = arith.constant 0 : index
      %c0_20 = arith.constant 0 : index
      %c0_21 = arith.constant 0 : index
      %38 = vector.load %arg3[%c0_19, %c0_20, %c0_21] : memref<1x32x1024xf32, #tpu.memory_space<vmem>>, vector<1x32x1024xf32>
      %39 = vector.shape_cast %38 : vector<1x32x1024xf32> to vector<32x1024xf32>
      %40 = arith.truncf %39 : vector<32x1024xf32> to vector<32x1024xbf16>
      %c0_22 = arith.constant 0 : index
      %c0_23 = arith.constant 0 : index
      %41 = vector.load %arg4[%c0_22, %c0_23] : memref<24x32xbf16, #tpu.memory_space<vmem>>, vector<24x32xbf16>
      %cst_24 = arith.constant dense<0.000000e+00> : vector<24x1024xf32>
      %42 = tpu.matmul %41, %40, %cst_24 {dimension_numbers = #tpu.dot_dimension_numbers<[1], [0], [0], [1], [0, 0, 1, 1], [], []>} : vector<24x32xbf16>, vector<32x1024xbf16>, vector<24x1024xf32> -> vector<24x1024xf32>
      %c0_25 = arith.constant 0 : index
      %c0_26 = arith.constant 0 : index
      %43 = vector.load %arg5[%c0_25, %c0_26] : memref<24x1xf32, #tpu.memory_space<vmem>>, vector<24x1xf32>
      %44 = vector.broadcast %43 : vector<24x1xf32> to vector<24x1024xf32>
      %45 = arith.addf %42, %44 : vector<24x1024xf32>
      %46 = vector.extract_strided_slice %45 {offsets = [0, 0], sizes = [4, 1024], strides = [1, 1]} : vector<24x1024xf32> to vector<4x1024xf32>
      %47 = arith.truncf %46 : vector<4x1024xf32> to vector<4x1024xbf16>
      %c0_27 = arith.constant 0 : index
      %c0_28 = arith.constant 0 : index
      %48 = vector.load %arg9[%c0_27, %c0_28] : memref<4x1024xbf16, #tpu.memory_space<vmem>>, vector<4x1024xbf16>
      tpu.vector_store %arg9[%c0_27, %c0_28], %47 {strides = array<i32>} : memref<4x1024xbf16, #tpu.memory_space<vmem>>, vector<4x1024xbf16>,
      %49 = vector.extract_strided_slice %45 {offsets = [4, 0], sizes = [20, 1024], strides = [1, 1]} : vector<24x1024xf32> to vector<20x1024xf32>
      %50 = vector.extract_strided_slice %49 {offsets = [0, 0], sizes = [20, 256], strides = [1, 1]} : vector<20x1024xf32> to vector<20x256xf32>
      %51 = vector.extract_strided_slice %49 {offsets = [0, 256], sizes = [20, 256], strides = [1, 1]} : vector<20x1024xf32> to vector<20x256xf32>
      %52 = arith.maximumf %50, %51 : vector<20x256xf32>
      %53 = vector.extract_strided_slice %49 {offsets = [0, 512], sizes = [20, 256], strides = [1, 1]} : vector<20x1024xf32> to vector<20x256xf32>
      %54 = vector.extract_strided_slice %49 {offsets = [0, 768], sizes = [20, 256], strides = [1, 1]} : vector<20x1024xf32> to vector<20x256xf32>
      %55 = arith.maximumf %53, %54 : vector<20x256xf32>
      %56 = arith.maximumf %52, %55 : vector<20x256xf32>
      %57 = vector.extract_strided_slice %56 {offsets = [0, 0], sizes = [4, 256], strides = [1, 1]} : vector<20x256xf32> to vector<4x256xf32>
      %58 = arith.truncf %57 : vector<4x256xf32> to vector<4x256xbf16>
      %c0_29 = arith.constant 0 : index
      %c0_30 = arith.constant 0 : index
      %59 = vector.load %arg10[%c0_29, %c0_30] : memref<4x256xbf16, #tpu.memory_space<vmem>>, vector<4x256xbf16>
      tpu.vector_store %arg10[%c0_29, %c0_30], %58 {strides = array<i32>} : memref<4x256xbf16, #tpu.memory_space<vmem>>, vector<4x256xbf16>,
      %60 = vector.extract_strided_slice %56 {offsets = [4, 0], sizes = [16, 256], strides = [1, 1]} : vector<20x256xf32> to vector<16x256xf32>
      %61 = arith.truncf %60 : vector<16x256xf32> to vector<16x256xbf16>
      %c0_31 = arith.constant 0 : index
      %c0_32 = arith.constant 0 : index
      %62 = vector.load %arg11[%c0_31, %c0_32] : memref<16x256xbf16, #tpu.memory_space<vmem>>, vector<16x256xbf16>
      tpu.vector_store %arg11[%c0_31, %c0_32], %61 {strides = array<i32>} : memref<16x256xbf16, #tpu.memory_space<vmem>>, vector<16x256xbf16>,
    } else {
    }
    %c256_i32 = arith.constant 256 : i32
    %3 = arith.muli %arg1, %c256_i32 : i32
    %4 = tpu.assume_multiple %3, 256 : i32
    %c0 = arith.constant 0 : index
    %5 = arith.index_cast %4 : i32 to index
    %6 = vector.load %arg9[%c0, %5] : memref<4x1024xbf16, #tpu.memory_space<vmem>>, vector<4x256xbf16>
    %c0_1 = arith.constant 0 : index
    %c0_2 = arith.constant 0 : index
    %7 = vector.load %arg10[%c0_1, %c0_2] : memref<4x256xbf16, #tpu.memory_space<vmem>>, vector<4x256xbf16>
    %cst = arith.constant dense<0.000000e+00> : vector<256x256xf32>
    %8 = tpu.matmul %7, %6, %cst {dimension_numbers = #tpu.dot_dimension_numbers<[0], [0], [1], [1], [0, 1, 1, 1], [], []>} : vector<4x256xbf16>, vector<4x256xbf16>, vector<256x256xf32> -> vector<256x256xf32>
    %cst_3 = arith.constant dense<0xFF800000> : vector<256xf32>
    %9 = vector.multi_reduction <maximumf>, %8, %cst_3 [0] : vector<256x256xf32> to vector<256xf32>
    %10 = vector.shape_cast %9 : vector<256xf32> to vector<1x256xf32>
    %11 = vector.broadcast %10 : vector<1x256xf32> to vector<256x256xf32>
    %12 = arith.subf %8, %11 : vector<256x256xf32>
    %13 = math.exp %12 : vector<256x256xf32>
    %cst_4 = arith.constant dense<0.000000e+00> : vector<256xf32>
    %14 = vector.multi_reduction <add>, %13, %cst_4 [0] : vector<256x256xf32> to vector<256xf32>
    %15 = vector.shape_cast %14 : vector<256xf32> to vector<1x256xf32>
    %16 = tpu.reciprocal %15 {approx = true} : vector<1x256xf32> -> vector<1x256xf32>
    %17 = vector.broadcast %16 : vector<1x256xf32> to vector<256x256xf32>
    %18 = arith.mulf %13, %17 : vector<256x256xf32>
    %c0_5 = arith.constant 0 : index
    %c0_6 = arith.constant 0 : index
    %19 = vector.load %arg11[%c0_5, %c0_6] : memref<16x256xbf16, #tpu.memory_space<vmem>>, vector<16x256xbf16>
    %20 = arith.truncf %18 : vector<256x256xf32> to vector<256x256xbf16>
    %cst_7 = arith.constant dense<0.000000e+00> : vector<16x256xf32>
    %21 = tpu.matmul %19, %20, %cst_7 {dimension_numbers = #tpu.dot_dimension_numbers<[1], [0], [0], [1], [0, 0, 1, 1], [], []>} : vector<16x256xbf16>, vector<256x256xbf16>, vector<16x256xf32> -> vector<16x256xf32>
    %c0_8 = arith.constant 0 : index
    %c0_9 = arith.constant 0 : index
    %22 = vector.load %arg6[%c0_8, %c0_9] : memref<32x16xbf16, #tpu.memory_space<vmem>>, vector<32x16xbf16>
    %23 = arith.truncf %21 : vector<16x256xf32> to vector<16x256xbf16>
    %cst_10 = arith.constant dense<0.000000e+00> : vector<32x256xf32>
    %24 = tpu.matmul %22, %23, %cst_10 {dimension_numbers = #tpu.dot_dimension_numbers<[1], [0], [0], [1], [0, 0, 1, 1], [], []>} : vector<32x16xbf16>, vector<16x256xbf16>, vector<32x256xf32> -> vector<32x256xf32>
    %c0_11 = arith.constant 0 : index
    %c0_12 = arith.constant 0 : index
    %25 = vector.load %arg7[%c0_11, %c0_12] : memref<32x1xf32, #tpu.memory_space<vmem>>, vector<32x1xf32>
    %26 = vector.broadcast %25 : vector<32x1xf32> to vector<32x256xf32>
    %27 = arith.addf %24, %26 : vector<32x256xf32>
    %c0_13 = arith.constant 0 : index
    %c0_14 = arith.constant 0 : index
    %28 = arith.index_cast %4 : i32 to index
    %29 = vector.load %arg3[%c0_13, %c0_14, %28] : memref<1x32x1024xf32, #tpu.memory_space<vmem>>, vector<1x32x256xf32>
    %30 = vector.shape_cast %29 : vector<1x32x256xf32> to vector<32x256xf32>
    %c0_15 = arith.constant 0 : index
    %31 = memref.load %arg2[%c0_15] : memref<1xf32, #tpu.memory_space<smem>>
    %32 = vector.broadcast %31 : f32 to vector<32x256xf32>
    %33 = arith.mulf %32, %27 : vector<32x256xf32>
    %34 = arith.addf %33, %30 : vector<32x256xf32>
    %c0_16 = arith.constant 0 : index
    %c0_17 = arith.constant 0 : index
    %c0_18 = arith.constant 0 : index
    %35 = vector.load %arg8[%c0_16, %c0_17, %c0_18] : memref<1x32x256xf32, #tpu.memory_space<vmem>>, vector<1x32x256xf32>
    %36 = vector.shape_cast %35 : vector<1x32x256xf32> to vector<32x256xf32>
    %37 = vector.shape_cast %34 : vector<32x256xf32> to vector<1x32x256xf32>
    tpu.vector_store %arg8[%c0_16, %c0_17, %c0_18], %37 {strides = array<i32>} : memref<1x32x256xf32, #tpu.memory_space<vmem>>, vector<1x32x256xf32>,
    return
  }
  func.func @transform_0(%arg0: i32, %arg1: i32) -> i32 {
    %c0_i32 = arith.constant 0 : i32
    %c0_i32_0 = arith.constant 0 : i32
    return %c0_i32 : i32
  }
  func.func @transform_1(%arg0: i32, %arg1: i32) -> (i32, i32, i32) {
    %c0_i32 = arith.constant 0 : i32
    %c0_i32_0 = arith.constant 0 : i32
    %c0_i32_1 = arith.constant 0 : i32
    return %arg0, %c0_i32, %c0_i32_0 : i32, i32, i32
  }
  func.func @transform_2(%arg0: i32, %arg1: i32) -> (i32, i32) {
    %c0_i32 = arith.constant 0 : i32
    %c0_i32_0 = arith.constant 0 : i32
    %c0_i32_1 = arith.constant 0 : i32
    return %c0_i32, %c0_i32_0 : i32, i32
  }
  func.func @transform_3(%arg0: i32, %arg1: i32) -> (i32, i32) {
    %c0_i32 = arith.constant 0 : i32
    %c0_i32_0 = arith.constant 0 : i32
    %c0_i32_1 = arith.constant 0 : i32
    return %c0_i32, %c0_i32_0 : i32, i32
  }
  func.func @transform_4(%arg0: i32, %arg1: i32) -> (i32, i32) {
    %c0_i32 = arith.constant 0 : i32
    %c0_i32_0 = arith.constant 0 : i32
    %c0_i32_1 = arith.constant 0 : i32
    return %c0_i32, %c0_i32_0 : i32, i32
  }
  func.func @transform_5(%arg0: i32, %arg1: i32) -> (i32, i32) {
    %c0_i32 = arith.constant 0 : i32
    %c0_i32_0 = arith.constant 0 : i32
    %c0_i32_1 = arith.constant 0 : i32
    return %c0_i32, %c0_i32_0 : i32, i32
  }
  func.func @transform_6(%arg0: i32, %arg1: i32) -> (i32, i32, i32) {
    %c0_i32 = arith.constant 0 : i32
    %c0_i32_0 = arith.constant 0 : i32
    return %arg0, %c0_i32, %arg1 : i32, i32, i32
  }
}

</mosaic_0001>

<llo_original>
// kernel: self_attention_forward.1
$region0: #{self_attention_forward.1}
  #allocation0 [shape = 'u32[]', space=smem, size = 0x4, offset = 0x4, fixed_abs, tag = 'smem constant byte address 0x4 - core index']
  #allocation1 [shape = 'u32[72,128]{1,0:T(1,128)}', space=vmem, size = 0x9000, scoped, tag = 'internal scratch']
  #allocation2 [shape = 'bf16[4,1024]{1,0:T(4,128)(2,1)}', space=vmem, size = 0x2000, scoped, tag = 'scratch operand']
  #allocation3 [shape = 'bf16[4,256]{1,0:T(4,128)(2,1)}', space=vmem, size = 0x800, scoped, tag = 'scratch operand']
  #allocation4 [shape = 'bf16[16,256]{1,0:T(8,128)(2,1)}', space=vmem, size = 0x2000, scoped, tag = 'scratch operand']
  #allocation5 [shape = 'f32[1]{0:T(128)S(6)}', space=smem, size = 0x200, scoped, tag = 'scoped memory for self_attention_forward.1']
  %s0 = inlined_call_operand.<no memory space> [shape: f32[1], index: 0, kind: input, shape index: {}]
  %s1 = inlined_call_operand.vmem [shape: f32[2,32,1024], index: 1, kind: input, shape index: {}]
  %s2 = inlined_call_operand.vmem [shape: bf16[24,32], index: 2, kind: input, shape index: {}]
  %s3 = inlined_call_operand.vmem [shape: f32[24,1], index: 3, kind: input, shape index: {}]
  %s4 = inlined_call_operand.vmem [shape: bf16[32,16], index: 4, kind: input, shape index: {}]
  %s5 = inlined_call_operand.vmem [shape: f32[32,1], index: 5, kind: input, shape index: {}]
  %s6 = inlined_call_operand.vmem [shape: f32[2,32,1024], index: 6, kind: output, shape index: {}]
  %s7 = sld [smem:[#allocation0]]
  $region80: #{self_attention_forward.1} parent=0
    _
  %s9 = ssub.s32 1, %s7
  %s10 = scalar_select 0, %s9, %s7
  %11 = sst [smem:[#allocation5]] %s0
  $region1: #{self_attention_forward.1} parent=0
    #allocation6 [shape = 'u8[65536]{0}', space=vmem, size = 0x10000, scoped, tag = 'output window, operand 0']
    loop: start=0, step=1, limit=10
    $region2: #{self_attention_forward.1} parent=1 // loop_pre_header
      _
    $region3: #{self_attention_forward.1} parent=1 // loop_header
      %s13 = sphi 0, %s17
      %p14 = scmp.ge.s32.totalorder %s13, 10
      %s20 = sphi 0, %s32
      %s21 = sphi 0, %s28
      %s22 = sphi 0, %s20
      %s23 = sphi 0, %s21
      %s24 = sphi 0, %s22
      %s25 = sphi 0, %s23
      %s33 = sphi 0, %s33
      %s35 = sphi 0, %s33
      %s36 = sphi 0, %s35
      %s50 = sphi 0, %s36
      %s56 = sphi 0, %s58
      %s59 = sphi 0, %s56
      %s60 = sphi 0, %s59
      %s76 = sphi 0, %s60
      %s80 = sphi 0, %s80
      %s82 = sphi 0, %s80
      %s83 = sphi 0, %s82
      %s97 = sphi 0, %s83
      %s101 = sphi 0, %s101
      %s103 = sphi 0, %s101
      %s104 = sphi 0, %s103
      %s118 = sphi 0, %s104
      %s122 = sphi 0, %s122
      %s124 = sphi 0, %s122
      %s125 = sphi 0, %s124
      %s139 = sphi 0, %s125
      %s143 = sphi 0, %s143
      %s145 = sphi 0, %s143
      %s146 = sphi 0, %s145
      %s160 = sphi 0, %s146
      %s168 = sphi 0, %s170
      %s171 = sphi 0, %s168
      %s172 = sphi 0, %s171
      %s188 = sphi 0, %s172
    $region4: #{self_attention_forward.1} parent=1 // loop_header_branch
      %16 = sbr.rel (%p14) target = $region8
    $region5: #{self_attention_forward.1} parent=1 // loop_body
      %s18 = ssub.s32 %s13, 1
      %s19 = ssub.s32 %s13, 2
      %s26 = sadd.s32 1, %s21
      %p27 = scmp.ge.s32.totalorder %s26, 4
      %s28 = scalar_select %p27, 0, %s26
      %s29 = sadd.s32 1, %s20
      %s30 = scalar_select %p27, %s29, %s20
      %p31 = scmp.ge.s32.totalorder %s30, 2
      %s32 = scalar_select %p31, 0, %s30
      %s34 = sadd.s32 %s33, 1
      %p37 = scmp.eq.s32.totalorder %s13, 7
      %p38 = scmp.ne.s32.totalorder %s33, %s35
      %p39 = scmp.eq.s32.totalorder %s13, 0
      %p40 = por %p38, %p39
      %p41 = scmp.ne.s32.totalorder %s33, %s35
      %p42 = scmp.eq.s32.totalorder %s18, 7
      %p43 = por %p41, %p42
      %p44 = scmp.ne.s32.totalorder %s35, %s36
      %p45 = scmp.eq.s32.totalorder %s18, 0
      %p46 = por %p44, %p45
      %p47 = scmp.ne.s32.totalorder %s35, %s36
      %p48 = scmp.eq.s32.totalorder %s19, 7
      %p49 = por %p47, %p48
      %p51 = scmp.ne.s32.totalorder %s36, %s50
      %p52 = scmp.eq.s32.totalorder %s19, 0
      %p53 = por %p51, %p52
      %s54 = ssub.s32 %s20, %s32
      %p55 = scmp.eq.s32.totalorder %s54, 0
      %s57 = sadd.s32 %s56, 1
      %s58 = scalar_select %p55, %s56, %s57
      %p61 = pneg %p55
      %p62 = scmp.eq.s32.totalorder %s13, 7
      %p63 = por %p61, %p62
      %p64 = scmp.ne.s32.totalorder %s56, %s59
      %p65 = scmp.eq.s32.totalorder %s13, 0
      %p66 = por %p64, %p65
      %p67 = scmp.ne.s32.totalorder %s56, %s59
      %p68 = scmp.eq.s32.totalorder %s18, 7
      %p69 = por %p67, %p68
      %p70 = scmp.ne.s32.totalorder %s59, %s60
      %p71 = scmp.eq.s32.totalorder %s18, 0
      %p72 = por %p70, %p71
      %p73 = scmp.ne.s32.totalorder %s59, %s60
      %p74 = scmp.eq.s32.totalorder %s19, 7
      %p75 = por %p73, %p74
      %p77 = scmp.ne.s32.totalorder %s60, %s76
      %p78 = scmp.eq.s32.totalorder %s19, 0
      %p79 = por %p77, %p78
      %s81 = sadd.s32 %s80, 1
      %p84 = scmp.eq.s32.totalorder %s13, 7
      %p85 = scmp.ne.s32.totalorder %s80, %s82
      %p86 = scmp.eq.s32.totalorder %s13, 0
      %p87 = por %p85, %p86
      %p88 = scmp.ne.s32.totalorder %s80, %s82
      %p89 = scmp.eq.s32.totalorder %s18, 7
      %p90 = por %p88, %p89
      %p91 = scmp.ne.s32.totalorder %s82, %s83
      %p92 = scmp.eq.s32.totalorder %s18, 0
      %p93 = por %p91, %p92
      %p94 = scmp.ne.s32.totalorder %s82, %s83
      %p95 = scmp.eq.s32.totalorder %s19, 7
      %p96 = por %p94, %p95
      %p98 = scmp.ne.s32.totalorder %s83, %s97
      %p99 = scmp.eq.s32.totalorder %s19, 0
      %p100 = por %p98, %p99
      %s102 = sadd.s32 %s101, 1
      %p105 = scmp.eq.s32.totalorder %s13, 7
      %p106 = scmp.ne.s32.totalorder %s101, %s103
      %p107 = scmp.eq.s32.totalorder %s13, 0
      %p108 = por %p106, %p107
      %p109 = scmp.ne.s32.totalorder %s101, %s103
      %p110 = scmp.eq.s32.totalorder %s18, 7
      %p111 = por %p109, %p110
      %p112 = scmp.ne.s32.totalorder %s103, %s104
      %p113 = scmp.eq.s32.totalorder %s18, 0
      %p114 = por %p112, %p113
      %p115 = scmp.ne.s32.totalorder %s103, %s104
      %p116 = scmp.eq.s32.totalorder %s19, 7
      %p117 = por %p115, %p116
      %p119 = scmp.ne.s32.totalorder %s104, %s118
      %p120 = scmp.eq.s32.totalorder %s19, 0
      %p121 = por %p119, %p120
      %s123 = sadd.s32 %s122, 1
      %p126 = scmp.eq.s32.totalorder %s13, 7
      %p127 = scmp.ne.s32.totalorder %s122, %s124
      %p128 = scmp.eq.s32.totalorder %s13, 0
      %p129 = por %p127, %p128
      %p130 = scmp.ne.s32.totalorder %s122, %s124
      %p131 = scmp.eq.s32.totalorder %s18, 7
      %p132 = por %p130, %p131
      %p133 = scmp.ne.s32.totalorder %s124, %s125
      %p134 = scmp.eq.s32.totalorder %s18, 0
      %p135 = por %p133, %p134
      %p136 = scmp.ne.s32.totalorder %s124, %s125
      %p137 = scmp.eq.s32.totalorder %s19, 7
      %p138 = por %p136, %p137
      %p140 = scmp.ne.s32.totalorder %s125, %s139
      %p141 = scmp.eq.s32.totalorder %s19, 0
      %p142 = por %p140, %p141
      %s144 = sadd.s32 %s143, 1
      %p147 = scmp.eq.s32.totalorder %s13, 7
      %p148 = scmp.ne.s32.totalorder %s143, %s145
      %p149 = scmp.eq.s32.totalorder %s13, 0
      %p150 = por %p148, %p149
      %p151 = scmp.ne.s32.totalorder %s143, %s145
      %p152 = scmp.eq.s32.totalorder %s18, 7
      %p153 = por %p151, %p152
      %p154 = scmp.ne.s32.totalorder %s145, %s146
      %p155 = scmp.eq.s32.totalorder %s18, 0
      %p156 = por %p154, %p155
      %p157 = scmp.ne.s32.totalorder %s145, %s146
      %p158 = scmp.eq.s32.totalorder %s19, 7
      %p159 = por %p157, %p158
      %p161 = scmp.ne.s32.totalorder %s146, %s160
      %p162 = scmp.eq.s32.totalorder %s19, 0
      %p163 = por %p161, %p162
      %s164 = ssub.s32 %s20, %s32
      %s165 = ssub.s32 %s21, %s28
      %s166 = sor.u32 %s164, %s165
      %p167 = scmp.eq.s32.totalorder %s166, 0
      %s169 = sadd.s32 %s168, 1
      %s170 = scalar_select %p167, %s168, %s169
      %p173 = pneg %p167
      %p174 = scmp.eq.s32.totalorder %s13, 7
      %p175 = por %p173, %p174
      %p176 = scmp.ne.s32.totalorder %s168, %s171
      %p177 = scmp.eq.s32.totalorder %s13, 0
      %p178 = por %p176, %p177
      %p179 = scmp.ne.s32.totalorder %s168, %s171
      %p180 = scmp.eq.s32.totalorder %s18, 7
      %p181 = por %p179, %p180
      %p182 = scmp.ne.s32.totalorder %s171, %s172
      %p183 = scmp.eq.s32.totalorder %s18, 0
      %p184 = por %p182, %p183
      %p185 = scmp.ne.s32.totalorder %s171, %s172
      %p186 = scmp.eq.s32.totalorder %s19, 7
      %p187 = por %p185, %p186
      %p189 = scmp.ne.s32.totalorder %s172, %s188
      %p190 = scmp.eq.s32.totalorder %s19, 0
      %p191 = por %p189, %p190
      %p192 = scmp.le.s32.totalorder 1, %s13
      %p193 = scmp.lt.s32.totalorder %s13, 9
      %p194 = pnand %p192, %p193
      %p195 = pneg %p194
      // Predicated region
      $region9: #{self_attention_forward.1} parent=5 // pred_check
        _
      $region10: #{self_attention_forward.1} parent=5 // pred_check_branch
        %197 = sbr.rel (%p194) target = $region12
      $region11: #{self_attention_forward.1} parent=5 // pred_region
        %s198 = ssub.s32 %s13, 1
        // Predicated region
        $region13: #{self_attention_forward.1} parent=11 // pred_check
          %p199 = pneg %p46
        $region14: #{self_attention_forward.1} parent=11 // pred_check_branch
          %201 = sbr.rel (%p199) target = $region16
        $region15: #{self_attention_forward.1} parent=11 // pred_region
          _
        $region16: #{self_attention_forward.1} parent=11 // pred_fallthru
          _
        // Predicated region
        $region17: #{self_attention_forward.1} parent=11 // pred_check
          %p202 = pneg %p93
        $region18: #{self_attention_forward.1} parent=11 // pred_check_branch
          %204 = sbr.rel (%p202) target = $region20
        $region19: #{self_attention_forward.1} parent=11 // pred_region
          _
        $region20: #{self_attention_forward.1} parent=11 // pred_fallthru
          _
        // Predicated region
        $region21: #{self_attention_forward.1} parent=11 // pred_check
          %p205 = pneg %p114
        $region22: #{self_attention_forward.1} parent=11 // pred_check_branch
          %207 = sbr.rel (%p205) target = $region24
        $region23: #{self_attention_forward.1} parent=11 // pred_region
          _
        $region24: #{self_attention_forward.1} parent=11 // pred_fallthru
          _
        // Predicated region
        $region25: #{self_attention_forward.1} parent=11 // pred_check
          %p208 = pneg %p135
        $region26: #{self_attention_forward.1} parent=11 // pred_check_branch
          %210 = sbr.rel (%p208) target = $region28
        $region27: #{self_attention_forward.1} parent=11 // pred_region
          _
        $region28: #{self_attention_forward.1} parent=11 // pred_fallthru
          _
        // Predicated region
        $region29: #{self_attention_forward.1} parent=11 // pred_check
          %p211 = pneg %p156
        $region30: #{self_attention_forward.1} parent=11 // pred_check_branch
          %213 = sbr.rel (%p211) target = $region32
        $region31: #{self_attention_forward.1} parent=11 // pred_region
          _
        $region32: #{self_attention_forward.1} parent=11 // pred_fallthru
          _
      $region12: #{self_attention_forward.1} parent=5 // pred_fallthru
        _
      %p214 = scmp.lt.s32.totalorder %s13, 8
      // Predicated region
      $region33: #{self_attention_forward.1} parent=5 // pred_check
        %p215 = pneg %p214
      $region34: #{self_attention_forward.1} parent=5 // pred_check_branch
        %217 = sbr.rel (%p215) target = $region36
      $region35: #{self_attention_forward.1} parent=5 // pred_region
        // Predicated region
        $region37: #{self_attention_forward.1} parent=35 // pred_check
          %p218 = pneg %p66
        $region38: #{self_attention_forward.1} parent=35 // pred_check_branch
          %220 = sbr.rel (%p218) target = $region40
        $region39: #{self_attention_forward.1} parent=35 // pred_region
          %p221 = scmp.lt.s32.totalorder %s20, 1
          %s222 = scalar_select %p221, %s20, 1
          %s223 = smul.addr %s222, 32
          %s224 = smul.addr %s223, 8
          %s225 = scalar_lea.vmem %s1, %s224
        $region40: #{self_attention_forward.1} parent=35 // pred_fallthru
          _
      $region36: #{self_attention_forward.1} parent=5 // pred_fallthru
        _
      %p226 = scmp.le.s32.totalorder 1, %s13
      %p227 = scmp.lt.s32.totalorder %s13, 9
      %p228 = pnand %p226, %p227
      %p229 = pneg %p228
      // Predicated region
      $region41: #{self_attention_forward.1} parent=5 // pred_check
        _
      $region42: #{self_attention_forward.1} parent=5 // pred_check_branch
        %231 = sbr.rel (%p228) target = $region44
      $region43: #{self_attention_forward.1} parent=5 // pred_region
        %s232 = ssub.s32 %s13, 1
        %p233 = pneg %p46
        %p234 = pneg %p43
        %p235 = scmp.lt.s32.totalorder %s22, 1
        %s236 = scalar_select %p235, %s22, 1
        %s237 = smul.addr %s236, 32
        %s238 = smul.addr %s237, 8
        %s239 = scalar_lea.vmem %s1, %s238
        %p240 = pneg %p72
        %p241 = pneg %p69
        %p242 = pneg %p93
        %p243 = pneg %p90
        %p244 = pneg %p114
        %p245 = pneg %p111
        %p246 = pneg %p135
        %p247 = pneg %p132
        %p248 = pneg %p156
        %p249 = pneg %p153
        %p250 = pneg %p184
        %p251 = pneg %p181
        %s252 = sand.u32 %s171, 1
        %s253 = sand.u32 %s171, 1
        %s254 = smul.addr %s253, 64
        %s255 = scalar_lea.vmem [#allocation6], %s254
        %p256 = scmp.lt.s32.totalorder %s22, 1
        %s257 = scalar_select %p256, %s22, 1
        %s258 = smul.addr %s257, 32
        %s259 = smul.addr %s258, 8
        %s260 = scalar_lea.vmem %s1, %s259
        %s261 = smul.u32 2, %s23
        %p263 = scmp.eq.s32.totalorder %s23, 0
        // Predicated region
        $region45: #{self_attention_forward.1} parent=43 // pred_check
          %p264 = pneg %p263
        $region46: #{self_attention_forward.1} parent=43 // pred_check_branch
          %266 = sbr.rel (%p264) target = $region48
        $region47: #{self_attention_forward.1} parent=43 // pred_region
          %v267 = vld [vmem:[%s260] sm:$0xff]
          %v268 = vld [vmem:[%s260 + $0x8] sm:$0xff]
          %v269 = vld [vmem:[%s260 + $0x10] sm:$0xff]
          %v270 = vld [vmem:[%s260 + $0x18] sm:$0xff]
          %v271 = vld [vmem:[%s260 + $0x20] sm:$0xff]
          %v272 = vld [vmem:[%s260 + $0x28] sm:$0xff]
          %v273 = vld [vmem:[%s260 + $0x30] sm:$0xff]
          %v274 = vld [vmem:[%s260 + $0x38] sm:$0xff]
          %v275 = vld [vmem:[%s260 + $0x40] sm:$0xff]
          %v276 = vld [vmem:[%s260 + $0x48] sm:$0xff]
          %v277 = vld [vmem:[%s260 + $0x50] sm:$0xff]
          %v278 = vld [vmem:[%s260 + $0x58] sm:$0xff]
          %v279 = vld [vmem:[%s260 + $0x60] sm:$0xff]
          %v280 = vld [vmem:[%s260 + $0x68] sm:$0xff]
          %v281 = vld [vmem:[%s260 + $0x70] sm:$0xff]
          %v282 = vld [vmem:[%s260 + $0x78] sm:$0xff]
          %v283 = vld [vmem:[%s260 + $0x80] sm:$0xff]
          %v284 = vld [vmem:[%s260 + $0x88] sm:$0xff]
          %v285 = vld [vmem:[%s260 + $0x90] sm:$0xff]
          %v286 = vld [vmem:[%s260 + $0x98] sm:$0xff]
          %v287 = vld [vmem:[%s260 + $0xa0] sm:$0xff]
          %v288 = vld [vmem:[%s260 + $0xa8] sm:$0xff]
          %v289 = vld [vmem:[%s260 + $0xb0] sm:$0xff]
          %v290 = vld [vmem:[%s260 + $0xb8] sm:$0xff]
          %v291 = vld [vmem:[%s260 + $0xc0] sm:$0xff]
          %v292 = vld [vmem:[%s260 + $0xc8] sm:$0xff]
          %v293 = vld [vmem:[%s260 + $0xd0] sm:$0xff]
          %v294 = vld [vmem:[%s260 + $0xd8] sm:$0xff]
          %v295 = vld [vmem:[%s260 + $0xe0] sm:$0xff]
          %v296 = vld [vmem:[%s260 + $0xe8] sm:$0xff]
          %v297 = vld [vmem:[%s260 + $0xf0] sm:$0xff]
          %v298 = vld [vmem:[%s260 + $0xf8] sm:$0xff]
          %v299 = vpack.c.bf16 %v275, %v267
          %v300 = vpack.c.bf16 %v276, %v268
          %v301 = vpack.c.bf16 %v277, %v269
          %v302 = vpack.c.bf16 %v278, %v270
          %v303 = vpack.c.bf16 %v279, %v271
          %v304 = vpack.c.bf16 %v280, %v272
          %v305 = vpack.c.bf16 %v281, %v273
          %v306 = vpack.c.bf16 %v282, %v274
          %v307 = vpack.c.bf16 %v291, %v283
          %v308 = vpack.c.bf16 %v292, %v284
          %v309 = vpack.c.bf16 %v293, %v285
          %v310 = vpack.c.bf16 %v294, %v286
          %v311 = vpack.c.bf16 %v295, %v287
          %v312 = vpack.c.bf16 %v296, %v288
          %v313 = vpack.c.bf16 %v297, %v289
          %v314 = vpack.c.bf16 %v298, %v290
          %v315 = vld [vmem:[%s2] sm:$0xf]
          %v316 = vld [vmem:[%s2 + $0x4] sm:$0xf]
          %v317 = vld [vmem:[%s2 + $0x8] sm:$0xf]
          %v318 = vld [vmem:[%s3] sm:$0xff]
          %v319 = vld [vmem:[%s3 + $0x8] sm:$0xff]
          %v320 = vld [vmem:[%s3 + $0x10] sm:$0xff]
          %322 = vset.pattern.permute.xlu0 0
          %323 = vperm.xlu0 %322, %v318
          %v324 = vpop.permute.xlu0 %323
          %327 = vset.pattern.permute.xlu0 0
          %328 = vperm.xlu0 %327, %v319
          %v329 = vpop.permute.xlu0 %328
          %332 = vset.pattern.permute.xlu0 0
          %333 = vperm.xlu0 %332, %v320
          %v334 = vpop.permute.xlu0 %333
          %v339 = vunpack.c.l.b16 %v315
          %v340 = vunpack.c.l.b16 %v316
          %v341 = vunpack.c.l.b16 %v317
          %v342 = vpack.c.b16 %v340, %v339
          %v343 = vpack.c.b16 %v341, %v341
          %vm344 = vcmask 261120
          %v346 = vsel %vm344, %v342, 0
          %v349 = vsel %vm344, %v343, 0
          %351 = vmatpush.bf16.msra.mxu0 0
          %352 = vmatpush.bf16.msra.mxu0 0
          %353 = vmatpush.bf16.msra.mxu0 0
          %354 = vmatpush.bf16.msra.mxu0 0
          %355 = vmatpush.bf16.msra.mxu0 0
          %356 = vmatpush.bf16.msra.mxu0 0
          %357 = vmatpush.bf16.msra.mxu0 %v307
          %358 = vmatpush.bf16.msra.mxu0 %v299
          %359 = vmatmul.bf16.gmra.mxu0 %v346
          %v360 = vpop.f32.mrf.mxu0
          %v361 = vadd.f32 %v324, %v360
          %v362 = vpop.f32.mrf.mxu0
          %v363 = vadd.f32 %v329, %v362
          %364 = vmatmul.bf16.gmra.mxu0 %v349
          %v365 = vpop.f32.mrf.mxu0
          %v366 = vadd.f32 %v334, %v365
          %v367 = vpop.f32.mrf.mxu0
          %368 = vdwg.mxu0
          %369 = vmatpush.bf16.msra.mxu0 0
          %370 = vmatpush.bf16.msra.mxu0 0
          %371 = vmatpush.bf16.msra.mxu0 0
          %372 = vmatpush.bf16.msra.mxu0 0
          %373 = vmatpush.bf16.msra.mxu0 0
          %374 = vmatpush.bf16.msra.mxu0 0
          %375 = vmatpush.bf16.msra.mxu0 %v308
          %376 = vmatpush.bf16.msra.mxu0 %v300
          %377 = vmatmul.bf16.gmra.mxu0 %v346
          %v378 = vpop.f32.mrf.mxu0
          %v379 = vadd.f32 %v324, %v378
          %v380 = vpop.f32.mrf.mxu0
          %v381 = vadd.f32 %v329, %v380
          %382 = vmatmul.bf16.gmra.mxu0 %v349
          %v383 = vpop.f32.mrf.mxu0
          %v384 = vadd.f32 %v334, %v383
          %v385 = vpop.f32.mrf.mxu0
          %386 = vdwg.mxu0
          %387 = vmatpush.bf16.msra.mxu0 0
          %388 = vmatpush.bf16.msra.mxu0 0
          %389 = vmatpush.bf16.msra.mxu0 0
          %390 = vmatpush.bf16.msra.mxu0 0
          %391 = vmatpush.bf16.msra.mxu0 0
          %392 = vmatpush.bf16.msra.mxu0 0
          %393 = vmatpush.bf16.msra.mxu0 %v309
          %394 = vmatpush.bf16.msra.mxu0 %v301
          %395 = vmatmul.bf16.gmra.mxu0 %v346
          %v396 = vpop.f32.mrf.mxu0
          %v397 = vadd.f32 %v324, %v396
          %v398 = vpop.f32.mrf.mxu0
          %v399 = vadd.f32 %v329, %v398
          %400 = vmatmul.bf16.gmra.mxu0 %v349
          %v401 = vpop.f32.mrf.mxu0
          %v402 = vadd.f32 %v334, %v401
          %v403 = vpop.f32.mrf.mxu0
          %404 = vdwg.mxu0
          %405 = vmatpush.bf16.msra.mxu0 0
          %406 = vmatpush.bf16.msra.mxu0 0
          %407 = vmatpush.bf16.msra.mxu0 0
          %408 = vmatpush.bf16.msra.mxu0 0
          %409 = vmatpush.bf16.msra.mxu0 0
          %410 = vmatpush.bf16.msra.mxu0 0
          %411 = vmatpush.bf16.msra.mxu0 %v310
          %412 = vmatpush.bf16.msra.mxu0 %v302
          %413 = vmatmul.bf16.gmra.mxu0 %v346
          %v414 = vpop.f32.mrf.mxu0
          %v415 = vadd.f32 %v324, %v414
          %v416 = vpop.f32.mrf.mxu0
          %v417 = vadd.f32 %v329, %v416
          %418 = vmatmul.bf16.gmra.mxu0 %v349
          %v419 = vpop.f32.mrf.mxu0
          %v420 = vadd.f32 %v334, %v419
          %v421 = vpop.f32.mrf.mxu0
          %422 = vdwg.mxu0
          %423 = vmatpush.bf16.msra.mxu0 0
          %424 = vmatpush.bf16.msra.mxu0 0
          %425 = vmatpush.bf16.msra.mxu0 0
          %426 = vmatpush.bf16.msra.mxu0 0
          %427 = vmatpush.bf16.msra.mxu0 0
          %428 = vmatpush.bf16.msra.mxu0 0
          %429 = vmatpush.bf16.msra.mxu0 %v311
          %430 = vmatpush.bf16.msra.mxu0 %v303
          %431 = vmatmul.bf16.gmra.mxu0 %v346
          %v432 = vpop.f32.mrf.mxu0
          %v433 = vadd.f32 %v324, %v432
          %v434 = vpop.f32.mrf.mxu0
          %v435 = vadd.f32 %v329, %v434
          %436 = vmatmul.bf16.gmra.mxu0 %v349
          %v437 = vpop.f32.mrf.mxu0
          %v438 = vadd.f32 %v334, %v437
          %v439 = vpop.f32.mrf.mxu0
          %440 = vdwg.mxu0
          %441 = vmatpush.bf16.msra.mxu0 0
          %442 = vmatpush.bf16.msra.mxu0 0
          %443 = vmatpush.bf16.msra.mxu0 0
          %444 = vmatpush.bf16.msra.mxu0 0
          %445 = vmatpush.bf16.msra.mxu0 0
          %446 = vmatpush.bf16.msra.mxu0 0
          %447 = vmatpush.bf16.msra.mxu0 %v312
          %448 = vmatpush.bf16.msra.mxu0 %v304
          %449 = vmatmul.bf16.gmra.mxu0 %v346
          %v450 = vpop.f32.mrf.mxu0
          %v451 = vadd.f32 %v324, %v450
          %v452 = vpop.f32.mrf.mxu0
          %v453 = vadd.f32 %v329, %v452
          %454 = vmatmul.bf16.gmra.mxu0 %v349
          %v455 = vpop.f32.mrf.mxu0
          %v456 = vadd.f32 %v334, %v455
          %v457 = vpop.f32.mrf.mxu0
          %458 = vdwg.mxu0
          %459 = vmatpush.bf16.msra.mxu0 0
          %460 = vmatpush.bf16.msra.mxu0 0
          %461 = vmatpush.bf16.msra.mxu0 0
          %462 = vmatpush.bf16.msra.mxu0 0
          %463 = vmatpush.bf16.msra.mxu0 0
          %464 = vmatpush.bf16.msra.mxu0 0
          %465 = vmatpush.bf16.msra.mxu0 %v313
          %466 = vmatpush.bf16.msra.mxu0 %v305
          %467 = vmatmul.bf16.gmra.mxu0 %v346
          %v468 = vpop.f32.mrf.mxu0
          %v469 = vadd.f32 %v324, %v468
          %v470 = vpop.f32.mrf.mxu0
          %v471 = vadd.f32 %v329, %v470
          %472 = vmatmul.bf16.gmra.mxu0 %v349
          %v473 = vpop.f32.mrf.mxu0
          %v474 = vadd.f32 %v334, %v473
          %v475 = vpop.f32.mrf.mxu0
          %476 = vdwg.mxu0
          %477 = vmatpush.bf16.msra.mxu0 0
          %478 = vmatpush.bf16.msra.mxu0 0
          %479 = vmatpush.bf16.msra.mxu0 0
          %480 = vmatpush.bf16.msra.mxu0 0
          %481 = vmatpush.bf16.msra.mxu0 0
          %482 = vmatpush.bf16.msra.mxu0 0
          %483 = vmatpush.bf16.msra.mxu0 %v314
          %484 = vmatpush.bf16.msra.mxu0 %v306
          %485 = vmatmul.bf16.gmra.mxu0 %v346
          %v486 = vpop.f32.mrf.mxu0
          %v487 = vadd.f32 %v324, %v486
          %v488 = vpop.f32.mrf.mxu0
          %v489 = vadd.f32 %v329, %v488
          %490 = vmatmul.bf16.gmra.mxu0 %v349
          %v491 = vpop.f32.mrf.mxu0
          %v492 = vadd.f32 %v334, %v491
          %v493 = vpop.f32.mrf.mxu0
          %494 = vdwg.mxu0
          %v495 = vpack.c.bf16 %v379, %v361
          %v496 = vpack.c.bf16 %v415, %v397
          %v497 = vpack.c.bf16 %v451, %v433
          %v498 = vpack.c.bf16 %v487, %v469
          %v503 = vrot.slane %v495, 2
          %v504 = vrot.slane %v496, 4
          %v505 = vrot.slane %v496, 6
          %v506 = vrot.slane %v497, 2
          %v507 = vrot.slane %v498, 4
          %v508 = vrot.slane %v498, 6
          %vm509 = vcmask 1041408
          %v512 = vsel %vm509, %v495, %v503
          %vm513 = vcmask 1045508
          %v516 = vsel %vm513, %v504, %v505
          %vm517 = vcmask 1043456
          %v518 = vsel %vm517, %v512, %v516
          %v521 = vsel %vm509, %v497, %v506
          %v524 = vsel %vm513, %v507, %v508
          %v525 = vsel %vm517, %v521, %v524
          %528 = vst [vmem:[#allocation2] sm:$0xff] %v518
          %529 = vst [vmem:[#allocation2 + $0x8] sm:$0xff] %v525
          %v530 = vmax.f32 %v361, %v397
          %v531 = vmax.f32 %v379, %v415
          %v532 = vmax.f32 %v363, %v399
          %v533 = vmax.f32 %v381, %v417
          %v534 = vmax.f32 %v366, %v402
          %v535 = vmax.f32 %v384, %v420
          %v536 = vmax.f32 %v433, %v469
          %v537 = vmax.f32 %v451, %v487
          %v538 = vmax.f32 %v435, %v471
          %v539 = vmax.f32 %v453, %v489
          %v540 = vmax.f32 %v438, %v474
          %v541 = vmax.f32 %v456, %v492
          %v542 = vmax.f32 %v530, %v536
          %v543 = vmax.f32 %v531, %v537
          %v544 = vmax.f32 %v532, %v538
          %v545 = vmax.f32 %v533, %v539
          %v546 = vmax.f32 %v534, %v540
          %v547 = vmax.f32 %v535, %v541
          %v548 = vpack.c.bf16 %v543, %v542
          %550 = vst.sshfl [vmem:[#allocation1] sm:$0xff pattern:$0x75643120] %v548
          %s551 = scalar_lea.vmem [#allocation1], 1
          %v552 = vld [vmem:[%s551] ss:$2 sm:$0xff]
          %554 = vst [vmem:[#allocation3] sm:$0xf] %v552
          %v555 = vpack.c.bf16 %v545, %v544
          %v556 = vpack.c.bf16 %v547, %v546
          %557 = vst [vmem:[#allocation4] sm:$0xff] %v555
          %558 = vst [vmem:[#allocation4 + $0x8] sm:$0xff] %v556
        $region48: #{self_attention_forward.1} parent=43 // pred_fallthru
          _
        %s559 = smul.u32 %s23, 256
        %s560 = sshra.s32 %s559, 7
        %s561 = sand.u32 %s559, 127
        %s562 = smul.addr %s560, 2
        %s563 = scalar_lea.vmem [#allocation2], %s562
        %v564 = vld [vmem:[%s563] sm:$0xf]
        %v565 = vld [vmem:[#allocation3] sm:$0xf]
        %567 = vst [vmem:[#allocation1] ss:$4 sm:$0xff] %v565
        %v568 = vld.sshfl [vmem:[#allocation1] sm:$0xff pattern:$0x73625140]
        %v569 = vld.sshfl [vmem:[#allocation1 + $0x8] sm:$0xff pattern:$0x73625140]
        %572 = vxpose.binary.xlu0.c.b16.start [1/16] %v569, %v568, 128
        %573 = vxpose.binary.xlu0.c.b16.cont [2/16] 0, 0, 128
        %574 = vxpose.binary.xlu0.c.b16.cont [3/16] 0, 0, 128
        %575 = vxpose.binary.xlu0.c.b16.cont [4/16] 0, 0, 128
        %576 = vxpose.binary.xlu0.c.b16.cont [5/16] 0, 0, 128
        %577 = vxpose.binary.xlu0.c.b16.cont [6/16] 0, 0, 128
        %578 = vxpose.binary.xlu0.c.b16.cont [7/16] 0, 0, 128
        %579 = vxpose.binary.xlu0.c.b16.end [8/16] 0, 0, 128
        %v580 = vpop.trf.xlu0
        %v581 = vpop.trf.xlu0
        %v582 = vpop.trf.xlu0
        %v583 = vpop.trf.xlu0
        %v584 = vpop.trf.xlu0
        %v585 = vpop.trf.xlu0
        %v586 = vpop.trf.xlu0
        %v587 = vpop.trf.xlu0
        %v588 = vpop.trf.xlu0
        %v589 = vpop.trf.xlu0
        %v590 = vpop.trf.xlu0
        %v591 = vpop.trf.xlu0
        %v592 = vpop.trf.xlu0
        %v593 = vpop.trf.xlu0
        %v594 = vpop.trf.xlu0
        %v595 = vpop.trf.xlu0
        %597 = vst [vmem:[#allocation1] ss:$4 sm:$0xff] %v564
        %v598 = vld.sshfl [vmem:[#allocation1] sm:$0xff pattern:$0x73625140]
        %v599 = vld.sshfl [vmem:[#allocation1 + $0x8] sm:$0xff pattern:$0x73625140]
        %vm600 = vcmask 31744
        %v602 = vsel %vm600, %v580, 0
        %v605 = vsel %vm600, %v582, 0
        %v608 = vsel %vm600, %v584, 0
        %v611 = vsel %vm600, %v586, 0
        %v614 = vsel %vm600, %v588, 0
        %v617 = vsel %vm600, %v590, 0
        %v620 = vsel %vm600, %v592, 0
        %v623 = vsel %vm600, %v594, 0
        %v626 = vsel %vm600, %v581, 0
        %v629 = vsel %vm600, %v583, 0
        %v632 = vsel %vm600, %v585, 0
        %v635 = vsel %vm600, %v587, 0
        %v638 = vsel %vm600, %v589, 0
        %v641 = vsel %vm600, %v591, 0
        %v644 = vsel %vm600, %v593, 0
        %v647 = vsel %vm600, %v595, 0
        %vm649 = vcmask 1041408
        %v650 = vsel %vm649, %v598, 0
        %v652 = vsel %vm649, %v599, 0
        %654 = vmatpush.bf16.msra.mxu0 0
        %655 = vmatpush.bf16.msra.mxu0 0
        %656 = vmatpush.bf16.msra.mxu0 0
        %657 = vmatpush.bf16.msra.mxu0 0
        %658 = vmatpush.bf16.msra.mxu0 0
        %659 = vmatpush.bf16.msra.mxu0 0
        %660 = vmatpush.bf16.msra.mxu0 0
        %661 = vmatpush.bf16.msra.mxu0 %v650
        %662 = vmatmul.bf16.gmra.mxu0 %v602
        %v663 = vpop.f32.mrf.mxu0
        %v664 = vadd.f32 0.0, %v663
        %v665 = vpop.f32.mrf.mxu0
        %v666 = vadd.f32 0.0, %v665
        %667 = vmatmul.bf16.gmra.mxu0 %v605
        %v668 = vpop.f32.mrf.mxu0
        %v669 = vadd.f32 0.0, %v668
        %v670 = vpop.f32.mrf.mxu0
        %v671 = vadd.f32 0.0, %v670
        %672 = vmatmul.bf16.gmra.mxu0 %v608
        %v673 = vpop.f32.mrf.mxu0
        %v674 = vadd.f32 0.0, %v673
        %v675 = vpop.f32.mrf.mxu0
        %v676 = vadd.f32 0.0, %v675
        %677 = vmatmul.bf16.gmra.mxu0 %v611
        %v678 = vpop.f32.mrf.mxu0
        %v679 = vadd.f32 0.0, %v678
        %v680 = vpop.f32.mrf.mxu0
        %v681 = vadd.f32 0.0, %v680
        %682 = vmatmul.bf16.gmra.mxu0 %v614
        %v683 = vpop.f32.mrf.mxu0
        %v684 = vadd.f32 0.0, %v683
        %v685 = vpop.f32.mrf.mxu0
        %v686 = vadd.f32 0.0, %v685
        %687 = vmatmul.bf16.gmra.mxu0 %v617
        %v688 = vpop.f32.mrf.mxu0
        %v689 = vadd.f32 0.0, %v688
        %v690 = vpop.f32.mrf.mxu0
        %v691 = vadd.f32 0.0, %v690
        %692 = vmatmul.bf16.gmra.mxu0 %v620
        %v693 = vpop.f32.mrf.mxu0
        %v694 = vadd.f32 0.0, %v693
        %v695 = vpop.f32.mrf.mxu0
        %v696 = vadd.f32 0.0, %v695
        %697 = vmatmul.bf16.gmra.mxu0 %v623
        %v698 = vpop.f32.mrf.mxu0
        %v699 = vadd.f32 0.0, %v698
        %v700 = vpop.f32.mrf.mxu0
        %v701 = vadd.f32 0.0, %v700
        %702 = vmatmul.bf16.gmra.mxu0 %v626
        %v703 = vpop.f32.mrf.mxu0
        %v704 = vadd.f32 0.0, %v703
        %v705 = vpop.f32.mrf.mxu0
        %v706 = vadd.f32 0.0, %v705
        %707 = vmatmul.bf16.gmra.mxu0 %v629
        %v708 = vpop.f32.mrf.mxu0
        %v709 = vadd.f32 0.0, %v708
        %v710 = vpop.f32.mrf.mxu0
        %v711 = vadd.f32 0.0, %v710
        %712 = vmatmul.bf16.gmra.mxu0 %v632
        %v713 = vpop.f32.mrf.mxu0
        %v714 = vadd.f32 0.0, %v713
        %v715 = vpop.f32.mrf.mxu0
        %v716 = vadd.f32 0.0, %v715
        %717 = vmatmul.bf16.gmra.mxu0 %v635
        %v718 = vpop.f32.mrf.mxu0
        %v719 = vadd.f32 0.0, %v718
        %v720 = vpop.f32.mrf.mxu0
        %v721 = vadd.f32 0.0, %v720
        %722 = vmatmul.bf16.gmra.mxu0 %v638
        %v723 = vpop.f32.mrf.mxu0
        %v724 = vadd.f32 0.0, %v723
        %v725 = vpop.f32.mrf.mxu0
        %v726 = vadd.f32 0.0, %v725
        %727 = vmatmul.bf16.gmra.mxu0 %v641
        %v728 = vpop.f32.mrf.mxu0
        %v729 = vadd.f32 0.0, %v728
        %v730 = vpop.f32.mrf.mxu0
        %v731 = vadd.f32 0.0, %v730
        %732 = vmatmul.bf16.gmra.mxu0 %v644
        %v733 = vpop.f32.mrf.mxu0
        %v734 = vadd.f32 0.0, %v733
        %v735 = vpop.f32.mrf.mxu0
        %v736 = vadd.f32 0.0, %v735
        %737 = vmatmul.bf16.gmra.mxu0 %v647
        %v738 = vpop.f32.mrf.mxu0
        %v739 = vadd.f32 0.0, %v738
        %v740 = vpop.f32.mrf.mxu0
        %v741 = vadd.f32 0.0, %v740
        %742 = vdwg.mxu0
        %743 = vmatpush.bf16.msra.mxu0 0
        %744 = vmatpush.bf16.msra.mxu0 0
        %745 = vmatpush.bf16.msra.mxu0 0
        %746 = vmatpush.bf16.msra.mxu0 0
        %747 = vmatpush.bf16.msra.mxu0 0
        %748 = vmatpush.bf16.msra.mxu0 0
        %749 = vmatpush.bf16.msra.mxu0 0
        %750 = vmatpush.bf16.msra.mxu0 %v652
        %751 = vmatmul.bf16.gmra.mxu0 %v602
        %v752 = vpop.f32.mrf.mxu0
        %v753 = vadd.f32 0.0, %v752
        %v754 = vpop.f32.mrf.mxu0
        %v755 = vadd.f32 0.0, %v754
        %756 = vmatmul.bf16.gmra.mxu0 %v605
        %v757 = vpop.f32.mrf.mxu0
        %v758 = vadd.f32 0.0, %v757
        %v759 = vpop.f32.mrf.mxu0
        %v760 = vadd.f32 0.0, %v759
        %761 = vmatmul.bf16.gmra.mxu0 %v608
        %v762 = vpop.f32.mrf.mxu0
        %v763 = vadd.f32 0.0, %v762
        %v764 = vpop.f32.mrf.mxu0
        %v765 = vadd.f32 0.0, %v764
        %766 = vmatmul.bf16.gmra.mxu0 %v611
        %v767 = vpop.f32.mrf.mxu0
        %v768 = vadd.f32 0.0, %v767
        %v769 = vpop.f32.mrf.mxu0
        %v770 = vadd.f32 0.0, %v769
        %771 = vmatmul.bf16.gmra.mxu0 %v614
        %v772 = vpop.f32.mrf.mxu0
        %v773 = vadd.f32 0.0, %v772
        %v774 = vpop.f32.mrf.mxu0
        %v775 = vadd.f32 0.0, %v774
        %776 = vmatmul.bf16.gmra.mxu0 %v617
        %v777 = vpop.f32.mrf.mxu0
        %v778 = vadd.f32 0.0, %v777
        %v779 = vpop.f32.mrf.mxu0
        %v780 = vadd.f32 0.0, %v779
        %781 = vmatmul.bf16.gmra.mxu0 %v620
        %v782 = vpop.f32.mrf.mxu0
        %v783 = vadd.f32 0.0, %v782
        %v784 = vpop.f32.mrf.mxu0
        %v785 = vadd.f32 0.0, %v784
        %786 = vmatmul.bf16.gmra.mxu0 %v623
        %v787 = vpop.f32.mrf.mxu0
        %v788 = vadd.f32 0.0, %v787
        %v789 = vpop.f32.mrf.mxu0
        %v790 = vadd.f32 0.0, %v789
        %791 = vmatmul.bf16.gmra.mxu0 %v626
        %v792 = vpop.f32.mrf.mxu0
        %v793 = vadd.f32 0.0, %v792
        %v794 = vpop.f32.mrf.mxu0
        %v795 = vadd.f32 0.0, %v794
        %796 = vmatmul.bf16.gmra.mxu0 %v629
        %v797 = vpop.f32.mrf.mxu0
        %v798 = vadd.f32 0.0, %v797
        %v799 = vpop.f32.mrf.mxu0
        %v800 = vadd.f32 0.0, %v799
        %801 = vmatmul.bf16.gmra.mxu0 %v632
        %v802 = vpop.f32.mrf.mxu0
        %v803 = vadd.f32 0.0, %v802
        %v804 = vpop.f32.mrf.mxu0
        %v805 = vadd.f32 0.0, %v804
        %806 = vmatmul.bf16.gmra.mxu0 %v635
        %v807 = vpop.f32.mrf.mxu0
        %v808 = vadd.f32 0.0, %v807
        %v809 = vpop.f32.mrf.mxu0
        %v810 = vadd.f32 0.0, %v809
        %811 = vmatmul.bf16.gmra.mxu0 %v638
        %v812 = vpop.f32.mrf.mxu0
        %v813 = vadd.f32 0.0, %v812
        %v814 = vpop.f32.mrf.mxu0
        %v815 = vadd.f32 0.0, %v814
        %816 = vmatmul.bf16.gmra.mxu0 %v641
        %v817 = vpop.f32.mrf.mxu0
        %v818 = vadd.f32 0.0, %v817
        %v819 = vpop.f32.mrf.mxu0
        %v820 = vadd.f32 0.0, %v819
        %821 = vmatmul.bf16.gmra.mxu0 %v644
        %v822 = vpop.f32.mrf.mxu0
        %v823 = vadd.f32 0.0, %v822
        %v824 = vpop.f32.mrf.mxu0
        %v825 = vadd.f32 0.0, %v824
        %826 = vmatmul.bf16.gmra.mxu0 %v647
        %v827 = vpop.f32.mrf.mxu0
        %v828 = vadd.f32 0.0, %v827
        %v829 = vpop.f32.mrf.mxu0
        %v830 = vadd.f32 0.0, %v829
        %831 = vdwg.mxu0
        %v832 = vmax.f32 %v664, %v669
        %v833 = vmax.f32 %v666, %v671
        %v834 = vmax.f32 %v832, %v674
        %v835 = vmax.f32 %v833, %v676
        %v836 = vmax.f32 %v834, %v679
        %v837 = vmax.f32 %v835, %v681
        %v838 = vmax.f32 %v836, %v684
        %v839 = vmax.f32 %v837, %v686
        %v840 = vmax.f32 %v838, %v689
        %v841 = vmax.f32 %v839, %v691
        %v842 = vmax.f32 %v840, %v694
        %v843 = vmax.f32 %v841, %v696
        %v844 = vmax.f32 %v842, %v699
        %v845 = vmax.f32 %v843, %v701
        %v846 = vmax.f32 %v844, %v704
        %v847 = vmax.f32 %v845, %v706
        %v848 = vmax.f32 %v846, %v709
        %v849 = vmax.f32 %v847, %v711
        %v850 = vmax.f32 %v848, %v714
        %v851 = vmax.f32 %v849, %v716
        %v852 = vmax.f32 %v850, %v719
        %v853 = vmax.f32 %v851, %v721
        %v854 = vmax.f32 %v852, %v724
        %v855 = vmax.f32 %v853, %v726
        %v856 = vmax.f32 %v854, %v729
        %v857 = vmax.f32 %v855, %v731
        %v858 = vmax.f32 %v856, %v734
        %v859 = vmax.f32 %v857, %v736
        %v860 = vmax.f32 %v858, %v739
        %v861 = vmax.f32 %v859, %v741
        %v862 = vmax.f32 %v860, %v861
        %v863 = vrot.slane %v862, 4
        %v864 = vmax.f32 %v862, %v863
        %v865 = vrot.slane %v864, 2
        %v866 = vmax.f32 %v864, %v865
        %v867 = vrot.slane %v866, 1
        %v868 = vmax.f32 %v866, %v867
        %v869 = vmax.f32 %v753, %v758
        %v870 = vmax.f32 %v755, %v760
        %v871 = vmax.f32 %v869, %v763
        %v872 = vmax.f32 %v870, %v765
        %v873 = vmax.f32 %v871, %v768
        %v874 = vmax.f32 %v872, %v770
        %v875 = vmax.f32 %v873, %v773
        %v876 = vmax.f32 %v874, %v775
        %v877 = vmax.f32 %v875, %v778
        %v878 = vmax.f32 %v876, %v780
        %v879 = vmax.f32 %v877, %v783
        %v880 = vmax.f32 %v878, %v785
        %v881 = vmax.f32 %v879, %v788
        %v882 = vmax.f32 %v880, %v790
        %v883 = vmax.f32 %v881, %v793
        %v884 = vmax.f32 %v882, %v795
        %v885 = vmax.f32 %v883, %v798
        %v886 = vmax.f32 %v884, %v800
        %v887 = vmax.f32 %v885, %v803
        %v888 = vmax.f32 %v886, %v805
        %v889 = vmax.f32 %v887, %v808
        %v890 = vmax.f32 %v888, %v810
        %v891 = vmax.f32 %v889, %v813
        %v892 = vmax.f32 %v890, %v815
        %v893 = vmax.f32 %v891, %v818
        %v894 = vmax.f32 %v892, %v820
        %v895 = vmax.f32 %v893, %v823
        %v896 = vmax.f32 %v894, %v825
        %v897 = vmax.f32 %v895, %v828
        %v898 = vmax.f32 %v896, %v830
        %v899 = vmax.f32 %v897, %v898
        %v900 = vrot.slane %v899, 4
        %v901 = vmax.f32 %v899, %v900
        %v902 = vrot.slane %v901, 2
        %v903 = vmax.f32 %v901, %v902
        %v904 = vrot.slane %v903, 1
        %v905 = vmax.f32 %v903, %v904
        %v906 = vsub.f32 %v664, %v868
        %v907 = vsub.f32 %v753, %v905
        %v908 = vsub.f32 %v666, %v868
        %v909 = vsub.f32 %v755, %v905
        %v910 = vsub.f32 %v669, %v868
        %v911 = vsub.f32 %v758, %v905
        %v912 = vsub.f32 %v671, %v868
        %v913 = vsub.f32 %v760, %v905
        %v914 = vsub.f32 %v674, %v868
        %v915 = vsub.f32 %v763, %v905
        %v916 = vsub.f32 %v676, %v868
        %v917 = vsub.f32 %v765, %v905
        %v918 = vsub.f32 %v679, %v868
        %v919 = vsub.f32 %v768, %v905
        %v920 = vsub.f32 %v681, %v868
        %v921 = vsub.f32 %v770, %v905
        %v922 = vsub.f32 %v684, %v868
        %v923 = vsub.f32 %v773, %v905
        %v924 = vsub.f32 %v686, %v868
        %v925 = vsub.f32 %v775, %v905
        %v926 = vsub.f32 %v689, %v868
        %v927 = vsub.f32 %v778, %v905
        %v928 = vsub.f32 %v691, %v868
        %v929 = vsub.f32 %v780, %v905
        %v930 = vsub.f32 %v694, %v868
        %v931 = vsub.f32 %v783, %v905
        %v932 = vsub.f32 %v696, %v868
        %v933 = vsub.f32 %v785, %v905
        %v934 = vsub.f32 %v699, %v868
        %v935 = vsub.f32 %v788, %v905
        %v936 = vsub.f32 %v701, %v868
        %v937 = vsub.f32 %v790, %v905
        %v938 = vsub.f32 %v704, %v868
        %v939 = vsub.f32 %v793, %v905
        %v940 = vsub.f32 %v706, %v868
        %v941 = vsub.f32 %v795, %v905
        %v942 = vsub.f32 %v709, %v868
        %v943 = vsub.f32 %v798, %v905
        %v944 = vsub.f32 %v711, %v868
        %v945 = vsub.f32 %v800, %v905
        %v946 = vsub.f32 %v714, %v868
        %v947 = vsub.f32 %v803, %v905
        %v948 = vsub.f32 %v716, %v868
        %v949 = vsub.f32 %v805, %v905
        %v950 = vsub.f32 %v719, %v868
        %v951 = vsub.f32 %v808, %v905
        %v952 = vsub.f32 %v721, %v868
        %v953 = vsub.f32 %v810, %v905
        %v954 = vsub.f32 %v724, %v868
        %v955 = vsub.f32 %v813, %v905
        %v956 = vsub.f32 %v726, %v868
        %v957 = vsub.f32 %v815, %v905
        %v958 = vsub.f32 %v729, %v868
        %v959 = vsub.f32 %v818, %v905
        %v960 = vsub.f32 %v731, %v868
        %v961 = vsub.f32 %v820, %v905
        %v962 = vsub.f32 %v734, %v868
        %v963 = vsub.f32 %v823, %v905
        %v964 = vsub.f32 %v736, %v868
        %v965 = vsub.f32 %v825, %v905
        %v966 = vsub.f32 %v739, %v868
        %v967 = vsub.f32 %v828, %v905
        %v968 = vsub.f32 %v741, %v868
        %v969 = vsub.f32 %v830, %v905
        %v970 = vmul.f32 %v906, 1.442695
        %v971 = vpow.pop %v970
        %v972 = vmul.f32 %v907, 1.442695
        %v973 = vpow.pop %v972
        %v974 = vmul.f32 %v908, 1.442695
        %v975 = vpow.pop %v974
        %v976 = vmul.f32 %v909, 1.442695
        %v977 = vpow.pop %v976
        %v978 = vmul.f32 %v910, 1.442695
        %v979 = vpow.pop %v978
        %v980 = vmul.f32 %v911, 1.442695
        %v981 = vpow.pop %v980
        %v982 = vmul.f32 %v912, 1.442695
        %v983 = vpow.pop %v982
        %v984 = vmul.f32 %v913, 1.442695
        %v985 = vpow.pop %v984
        %v986 = vmul.f32 %v914, 1.442695
        %v987 = vpow.pop %v986
        %v988 = vmul.f32 %v915, 1.442695
        %v989 = vpow.pop %v988
        %v990 = vmul.f32 %v916, 1.442695
        %v991 = vpow.pop %v990
        %v992 = vmul.f32 %v917, 1.442695
        %v993 = vpow.pop %v992
        %v994 = vmul.f32 %v918, 1.442695
        %v995 = vpow.pop %v994
        %v996 = vmul.f32 %v919, 1.442695
        %v997 = vpow.pop %v996
        %v998 = vmul.f32 %v920, 1.442695
        %v999 = vpow.pop %v998
        %v1000 = vmul.f32 %v921, 1.442695
        %v1001 = vpow.pop %v1000
        %v1002 = vmul.f32 %v922, 1.442695
        %v1003 = vpow.pop %v1002
        %v1004 = vmul.f32 %v923, 1.442695
        %v1005 = vpow.pop %v1004
        %v1006 = vmul.f32 %v924, 1.442695
        %v1007 = vpow.pop %v1006
        %v1008 = vmul.f32 %v925, 1.442695
        %v1009 = vpow.pop %v1008
        %v1010 = vmul.f32 %v926, 1.442695
        %v1011 = vpow.pop %v1010
        %v1012 = vmul.f32 %v927, 1.442695
        %v1013 = vpow.pop %v1012
        %v1014 = vmul.f32 %v928, 1.442695
        %v1015 = vpow.pop %v1014
        %v1016 = vmul.f32 %v929, 1.442695
        %v1017 = vpow.pop %v1016
        %v1018 = vmul.f32 %v930, 1.442695
        %v1019 = vpow.pop %v1018
        %v1020 = vmul.f32 %v931, 1.442695
        %v1021 = vpow.pop %v1020
        %v1022 = vmul.f32 %v932, 1.442695
        %v1023 = vpow.pop %v1022
        %v1024 = vmul.f32 %v933, 1.442695
        %v1025 = vpow.pop %v1024
        %v1026 = vmul.f32 %v934, 1.442695
        %v1027 = vpow.pop %v1026
        %v1028 = vmul.f32 %v935, 1.442695
        %v1029 = vpow.pop %v1028
        %v1030 = vmul.f32 %v936, 1.442695
        %v1031 = vpow.pop %v1030
        %v1032 = vmul.f32 %v937, 1.442695
        %v1033 = vpow.pop %v1032
        %v1034 = vmul.f32 %v938, 1.442695
        %v1035 = vpow.pop %v1034
        %v1036 = vmul.f32 %v939, 1.442695
        %v1037 = vpow.pop %v1036
        %v1038 = vmul.f32 %v940, 1.442695
        %v1039 = vpow.pop %v1038
        %v1040 = vmul.f32 %v941, 1.442695
        %v1041 = vpow.pop %v1040
        %v1042 = vmul.f32 %v942, 1.442695
        %v1043 = vpow.pop %v1042
        %v1044 = vmul.f32 %v943, 1.442695
        %v1045 = vpow.pop %v1044
        %v1046 = vmul.f32 %v944, 1.442695
        %v1047 = vpow.pop %v1046
        %v1048 = vmul.f32 %v945, 1.442695
        %v1049 = vpow.pop %v1048
        %v1050 = vmul.f32 %v946, 1.442695
        %v1051 = vpow.pop %v1050
        %v1052 = vmul.f32 %v947, 1.442695
        %v1053 = vpow.pop %v1052
        %v1054 = vmul.f32 %v948, 1.442695
        %v1055 = vpow.pop %v1054
        %v1056 = vmul.f32 %v949, 1.442695
        %v1057 = vpow.pop %v1056
        %v1058 = vmul.f32 %v950, 1.442695
        %v1059 = vpow.pop %v1058
        %v1060 = vmul.f32 %v951, 1.442695
        %v1061 = vpow.pop %v1060
        %v1062 = vmul.f32 %v952, 1.442695
        %v1063 = vpow.pop %v1062
        %v1064 = vmul.f32 %v953, 1.442695
        %v1065 = vpow.pop %v1064
        %v1066 = vmul.f32 %v954, 1.442695
        %v1067 = vpow.pop %v1066
        %v1068 = vmul.f32 %v955, 1.442695
        %v1069 = vpow.pop %v1068
        %v1070 = vmul.f32 %v956, 1.442695
        %v1071 = vpow.pop %v1070
        %v1072 = vmul.f32 %v957, 1.442695
        %v1073 = vpow.pop %v1072
        %v1074 = vmul.f32 %v958, 1.442695
        %v1075 = vpow.pop %v1074
        %v1076 = vmul.f32 %v959, 1.442695
        %v1077 = vpow.pop %v1076
        %v1078 = vmul.f32 %v960, 1.442695
        %v1079 = vpow.pop %v1078
        %v1080 = vmul.f32 %v961, 1.442695
        %v1081 = vpow.pop %v1080
        %v1082 = vmul.f32 %v962, 1.442695
        %v1083 = vpow.pop %v1082
        %v1084 = vmul.f32 %v963, 1.442695
        %v1085 = vpow.pop %v1084
        %v1086 = vmul.f32 %v964, 1.442695
        %v1087 = vpow.pop %v1086
        %v1088 = vmul.f32 %v965, 1.442695
        %v1089 = vpow.pop %v1088
        %v1090 = vmul.f32 %v966, 1.442695
        %v1091 = vpow.pop %v1090
        %v1092 = vmul.f32 %v967, 1.442695
        %v1093 = vpow.pop %v1092
        %v1094 = vmul.f32 %v968, 1.442695
        %v1095 = vpow.pop %v1094
        %v1096 = vmul.f32 %v969, 1.442695
        %v1097 = vpow.pop %v1096
        %v1098 = vadd.f32 %v971, %v975
        %v1099 = vadd.f32 %v1098, %v979
        %v1100 = vadd.f32 %v1099, %v983
        %v1101 = vadd.f32 %v1100, %v987
        %v1102 = vadd.f32 %v1101, %v991
        %v1103 = vadd.f32 %v1102, %v995
        %v1104 = vadd.f32 %v1103, %v999
        %v1105 = vadd.f32 %v1104, %v1003
        %v1106 = vadd.f32 %v1105, %v1007
        %v1107 = vadd.f32 %v1106, %v1011
        %v1108 = vadd.f32 %v1107, %v1015
        %v1109 = vadd.f32 %v1108, %v1019
        %v1110 = vadd.f32 %v1109, %v1023
        %v1111 = vadd.f32 %v1110, %v1027
        %v1112 = vadd.f32 %v1111, %v1031
        %v1113 = vadd.f32 %v1112, %v1035
        %v1114 = vadd.f32 %v1113, %v1039
        %v1115 = vadd.f32 %v1114, %v1043
        %v1116 = vadd.f32 %v1115, %v1047
        %v1117 = vadd.f32 %v1116, %v1051
        %v1118 = vadd.f32 %v1117, %v1055
        %v1119 = vadd.f32 %v1118, %v1059
        %v1120 = vadd.f32 %v1119, %v1063
        %v1121 = vadd.f32 %v1120, %v1067
        %v1122 = vadd.f32 %v1121, %v1071
        %v1123 = vadd.f32 %v1122, %v1075
        %v1124 = vadd.f32 %v1123, %v1079
        %v1125 = vadd.f32 %v1124, %v1083
        %v1126 = vadd.f32 %v1125, %v1087
        %v1127 = vadd.f32 %v1126, %v1091
        %v1128 = vadd.f32 %v1127, %v1095
        %v1129 = vrot.slane %v1128, 4
        %v1130 = vadd.f32 %v1128, %v1129
        %v1131 = vrot.slane %v1130, 2
        %v1132 = vadd.f32 %v1130, %v1131
        %v1133 = vrot.slane %v1132, 1
        %v1134 = vadd.f32 %v1132, %v1133
        %v1135 = vadd.f32 %v973, %v977
        %v1136 = vadd.f32 %v1135, %v981
        %v1137 = vadd.f32 %v1136, %v985
        %v1138 = vadd.f32 %v1137, %v989
        %v1139 = vadd.f32 %v1138, %v993
        %v1140 = vadd.f32 %v1139, %v997
        %v1141 = vadd.f32 %v1140, %v1001
        %v1142 = vadd.f32 %v1141, %v1005
        %v1143 = vadd.f32 %v1142, %v1009
        %v1144 = vadd.f32 %v1143, %v1013
        %v1145 = vadd.f32 %v1144, %v1017
        %v1146 = vadd.f32 %v1145, %v1021
        %v1147 = vadd.f32 %v1146, %v1025
        %v1148 = vadd.f32 %v1147, %v1029
        %v1149 = vadd.f32 %v1148, %v1033
        %v1150 = vadd.f32 %v1149, %v1037
        %v1151 = vadd.f32 %v1150, %v1041
        %v1152 = vadd.f32 %v1151, %v1045
        %v1153 = vadd.f32 %v1152, %v1049
        %v1154 = vadd.f32 %v1153, %v1053
        %v1155 = vadd.f32 %v1154, %v1057
        %v1156 = vadd.f32 %v1155, %v1061
        %v1157 = vadd.f32 %v1156, %v1065
        %v1158 = vadd.f32 %v1157, %v1069
        %v1159 = vadd.f32 %v1158, %v1073
        %v1160 = vadd.f32 %v1159, %v1077
        %v1161 = vadd.f32 %v1160, %v1081
        %v1162 = vadd.f32 %v1161, %v1085
        %v1163 = vadd.f32 %v1162, %v1089
        %v1164 = vadd.f32 %v1163, %v1093
        %v1165 = vadd.f32 %v1164, %v1097
        %v1166 = vrot.slane %v1165, 4
        %v1167 = vadd.f32 %v1165, %v1166
        %v1168 = vrot.slane %v1167, 2
        %v1169 = vadd.f32 %v1167, %v1168
        %v1170 = vrot.slane %v1169, 1
        %v1171 = vadd.f32 %v1169, %v1170
        %v1172 = vrcp.pop %v1134
        %v1173 = vrcp.pop %v1171
        %v1174 = vmul.f32 %v971, %v1172
        %v1175 = vmul.f32 %v973, %v1173
        %v1176 = vmul.f32 %v975, %v1172
        %v1177 = vmul.f32 %v977, %v1173
        %v1178 = vmul.f32 %v979, %v1172
        %v1179 = vmul.f32 %v981, %v1173
        %v1180 = vmul.f32 %v983, %v1172
        %v1181 = vmul.f32 %v985, %v1173
        %v1182 = vmul.f32 %v987, %v1172
        %v1183 = vmul.f32 %v989, %v1173
        %v1184 = vmul.f32 %v991, %v1172
        %v1185 = vmul.f32 %v993, %v1173
        %v1186 = vmul.f32 %v995, %v1172
        %v1187 = vmul.f32 %v997, %v1173
        %v1188 = vmul.f32 %v999, %v1172
        %v1189 = vmul.f32 %v1001, %v1173
        %v1190 = vmul.f32 %v1003, %v1172
        %v1191 = vmul.f32 %v1005, %v1173
        %v1192 = vmul.f32 %v1007, %v1172
        %v1193 = vmul.f32 %v1009, %v1173
        %v1194 = vmul.f32 %v1011, %v1172
        %v1195 = vmul.f32 %v1013, %v1173
        %v1196 = vmul.f32 %v1015, %v1172
        %v1197 = vmul.f32 %v1017, %v1173
        %v1198 = vmul.f32 %v1019, %v1172
        %v1199 = vmul.f32 %v1021, %v1173
        %v1200 = vmul.f32 %v1023, %v1172
        %v1201 = vmul.f32 %v1025, %v1173
        %v1202 = vmul.f32 %v1027, %v1172
        %v1203 = vmul.f32 %v1029, %v1173
        %v1204 = vmul.f32 %v1031, %v1172
        %v1205 = vmul.f32 %v1033, %v1173
        %v1206 = vmul.f32 %v1035, %v1172
        %v1207 = vmul.f32 %v1037, %v1173
        %v1208 = vmul.f32 %v1039, %v1172
        %v1209 = vmul.f32 %v1041, %v1173
        %v1210 = vmul.f32 %v1043, %v1172
        %v1211 = vmul.f32 %v1045, %v1173
        %v1212 = vmul.f32 %v1047, %v1172
        %v1213 = vmul.f32 %v1049, %v1173
        %v1214 = vmul.f32 %v1051, %v1172
        %v1215 = vmul.f32 %v1053, %v1173
        %v1216 = vmul.f32 %v1055, %v1172
        %v1217 = vmul.f32 %v1057, %v1173
        %v1218 = vmul.f32 %v1059, %v1172
        %v1219 = vmul.f32 %v1061, %v1173
        %v1220 = vmul.f32 %v1063, %v1172
        %v1221 = vmul.f32 %v1065, %v1173
        %v1222 = vmul.f32 %v1067, %v1172
        %v1223 = vmul.f32 %v1069, %v1173
        %v1224 = vmul.f32 %v1071, %v1172
        %v1225 = vmul.f32 %v1073, %v1173
        %v1226 = vmul.f32 %v1075, %v1172
        %v1227 = vmul.f32 %v1077, %v1173
        %v1228 = vmul.f32 %v1079, %v1172
        %v1229 = vmul.f32 %v1081, %v1173
        %v1230 = vmul.f32 %v1083, %v1172
        %v1231 = vmul.f32 %v1085, %v1173
        %v1232 = vmul.f32 %v1087, %v1172
        %v1233 = vmul.f32 %v1089, %v1173
        %v1234 = vmul.f32 %v1091, %v1172
        %v1235 = vmul.f32 %v1093, %v1173
        %v1236 = vmul.f32 %v1095, %v1172
        %v1237 = vmul.f32 %v1097, %v1173
        %v1238 = vld [vmem:[#allocation4] sm:$0xff]
        %v1239 = vld [vmem:[#allocation4 + $0x8] sm:$0xff]
        %v1240 = vpack.c.bf16 %v1176, %v1174
        %v1241 = vpack.c.bf16 %v1177, %v1175
        %v1242 = vpack.c.bf16 %v1180, %v1178
        %v1243 = vpack.c.bf16 %v1181, %v1179
        %v1244 = vpack.c.bf16 %v1184, %v1182
        %v1245 = vpack.c.bf16 %v1185, %v1183
        %v1246 = vpack.c.bf16 %v1188, %v1186
        %v1247 = vpack.c.bf16 %v1189, %v1187
        %v1248 = vpack.c.bf16 %v1192, %v1190
        %v1249 = vpack.c.bf16 %v1193, %v1191
        %v1250 = vpack.c.bf16 %v1196, %v1194
        %v1251 = vpack.c.bf16 %v1197, %v1195
        %v1252 = vpack.c.bf16 %v1200, %v1198
        %v1253 = vpack.c.bf16 %v1201, %v1199
        %v1254 = vpack.c.bf16 %v1204, %v1202
        %v1255 = vpack.c.bf16 %v1205, %v1203
        %v1256 = vpack.c.bf16 %v1208, %v1206
        %v1257 = vpack.c.bf16 %v1209, %v1207
        %v1258 = vpack.c.bf16 %v1212, %v1210
        %v1259 = vpack.c.bf16 %v1213, %v1211
        %v1260 = vpack.c.bf16 %v1216, %v1214
        %v1261 = vpack.c.bf16 %v1217, %v1215
        %v1262 = vpack.c.bf16 %v1220, %v1218
        %v1263 = vpack.c.bf16 %v1221, %v1219
        %v1264 = vpack.c.bf16 %v1224, %v1222
        %v1265 = vpack.c.bf16 %v1225, %v1223
        %v1266 = vpack.c.bf16 %v1228, %v1226
        %v1267 = vpack.c.bf16 %v1229, %v1227
        %v1268 = vpack.c.bf16 %v1232, %v1230
        %v1269 = vpack.c.bf16 %v1233, %v1231
        %v1270 = vpack.c.bf16 %v1236, %v1234
        %v1271 = vpack.c.bf16 %v1237, %v1235
        %v1274 = vunpack.c.l.b16 %v1238
        %v1275 = vunpack.c.h.b16 %v1238
        %v1276 = vunpack.c.l.b16 %v1239
        %v1277 = vunpack.c.h.b16 %v1239
        %v1278 = vpack.c.b16 %v1276, %v1274
        %v1279 = vpack.c.b16 %v1277, %v1275
        %1282 = vmatpush.bf16.msra.mxu0 %v1254
        %1283 = vmatpush.bf16.msra.mxu0 %v1252
        %1284 = vmatpush.bf16.msra.mxu0 %v1250
        %1285 = vmatpush.bf16.msra.mxu0 %v1248
        %1286 = vmatpush.bf16.msra.mxu0 %v1246
        %1287 = vmatpush.bf16.msra.mxu0 %v1244
        %1288 = vmatpush.bf16.msra.mxu0 %v1242
        %1289 = vmatpush.bf16.msra.mxu0 %v1240
        %1290 = vmatmul.bf16.gmra.mxu0 %v1278
        %v1291 = vpop.f32.mrf.mxu0
        %v1292 = vadd.f32 0.0, %v1291
        %v1293 = vpop.f32.mrf.mxu0
        %v1294 = vadd.f32 0.0, %v1293
        %1295 = vdwg.mxu0
        %1296 = vmatpush.bf16.msra.mxu0 %v1270
        %1297 = vmatpush.bf16.msra.mxu0 %v1268
        %1298 = vmatpush.bf16.msra.mxu0 %v1266
        %1299 = vmatpush.bf16.msra.mxu0 %v1264
        %1300 = vmatpush.bf16.msra.mxu0 %v1262
        %1301 = vmatpush.bf16.msra.mxu0 %v1260
        %1302 = vmatpush.bf16.msra.mxu0 %v1258
        %1303 = vmatpush.bf16.msra.mxu0 %v1256
        %1304 = vmatmul.bf16.gmra.mxu0 %v1279
        %v1305 = vpop.f32.mrf.mxu0
        %v1306 = vadd.f32 %v1292, %v1305
        %v1307 = vpop.f32.mrf.mxu0
        %v1308 = vadd.f32 %v1294, %v1307
        %1309 = vdwg.mxu0
        %1310 = vmatpush.bf16.msra.mxu0 %v1255
        %1311 = vmatpush.bf16.msra.mxu0 %v1253
        %1312 = vmatpush.bf16.msra.mxu0 %v1251
        %1313 = vmatpush.bf16.msra.mxu0 %v1249
        %1314 = vmatpush.bf16.msra.mxu0 %v1247
        %1315 = vmatpush.bf16.msra.mxu0 %v1245
        %1316 = vmatpush.bf16.msra.mxu0 %v1243
        %1317 = vmatpush.bf16.msra.mxu0 %v1241
        %1318 = vmatmul.bf16.gmra.mxu0 %v1278
        %v1319 = vpop.f32.mrf.mxu0
        %v1320 = vadd.f32 0.0, %v1319
        %v1321 = vpop.f32.mrf.mxu0
        %v1322 = vadd.f32 0.0, %v1321
        %1323 = vdwg.mxu0
        %1324 = vmatpush.bf16.msra.mxu0 %v1271
        %1325 = vmatpush.bf16.msra.mxu0 %v1269
        %1326 = vmatpush.bf16.msra.mxu0 %v1267
        %1327 = vmatpush.bf16.msra.mxu0 %v1265
        %1328 = vmatpush.bf16.msra.mxu0 %v1263
        %1329 = vmatpush.bf16.msra.mxu0 %v1261
        %1330 = vmatpush.bf16.msra.mxu0 %v1259
        %1331 = vmatpush.bf16.msra.mxu0 %v1257
        %1332 = vmatmul.bf16.gmra.mxu0 %v1279
        %v1333 = vpop.f32.mrf.mxu0
        %v1334 = vadd.f32 %v1320, %v1333
        %v1335 = vpop.f32.mrf.mxu0
        %v1336 = vadd.f32 %v1322, %v1335
        %1337 = vdwg.mxu0
        %v1338 = vld [vmem:[%s4] sm:$0xf]
        %v1339 = vld [vmem:[%s4 + $0x4] sm:$0xf]
        %v1340 = vld [vmem:[%s4 + $0x8] sm:$0xf]
        %v1341 = vld [vmem:[%s4 + $0xc] sm:$0xf]
        %v1342 = vpack.c.bf16 %v1308, %v1306
        %v1343 = vpack.c.bf16 %v1336, %v1334
        %v1344 = vld [vmem:[%s5] sm:$0xff]
        %v1345 = vld [vmem:[%s5 + $0x8] sm:$0xff]
        %v1346 = vld [vmem:[%s5 + $0x10] sm:$0xff]
        %v1347 = vld [vmem:[%s5 + $0x18] sm:$0xff]
        %1349 = vset.pattern.permute.xlu0 0
        %1350 = vperm.xlu0 %1349, %v1344
        %v1351 = vpop.permute.xlu0 %1350
        %1354 = vset.pattern.permute.xlu0 0
        %1355 = vperm.xlu0 %1354, %v1345
        %v1356 = vpop.permute.xlu0 %1355
        %1359 = vset.pattern.permute.xlu0 0
        %1360 = vperm.xlu0 %1359, %v1346
        %v1361 = vpop.permute.xlu0 %1360
        %1364 = vset.pattern.permute.xlu0 0
        %1365 = vperm.xlu0 %1364, %v1347
        %v1366 = vpop.permute.xlu0 %1365
        %v1372 = vunpack.c.l.b16 %v1338
        %v1373 = vunpack.c.l.b16 %v1339
        %v1374 = vunpack.c.l.b16 %v1340
        %v1375 = vunpack.c.l.b16 %v1341
        %v1376 = vpack.c.b16 %v1373, %v1372
        %v1377 = vpack.c.b16 %v1375, %v1374
        %vm1378 = vcmask 130048
        %v1380 = vsel %vm1378, %v1376, 0
        %v1383 = vsel %vm1378, %v1377, 0
        %1385 = vmatpush.bf16.msra.mxu0 0
        %1386 = vmatpush.bf16.msra.mxu0 0
        %1387 = vmatpush.bf16.msra.mxu0 0
        %1388 = vmatpush.bf16.msra.mxu0 0
        %1389 = vmatpush.bf16.msra.mxu0 0
        %1390 = vmatpush.bf16.msra.mxu0 0
        %1391 = vmatpush.bf16.msra.mxu0 0
        %1392 = vmatpush.bf16.msra.mxu0 %v1342
        %1393 = vmatmul.bf16.gmra.mxu0 %v1380
        %v1394 = vpop.f32.mrf.mxu0
        %v1395 = vadd.f32 %v1351, %v1394
        %v1396 = vpop.f32.mrf.mxu0
        %v1397 = vadd.f32 %v1356, %v1396
        %1398 = vmatmul.bf16.gmra.mxu0 %v1383
        %v1399 = vpop.f32.mrf.mxu0
        %v1400 = vadd.f32 %v1361, %v1399
        %v1401 = vpop.f32.mrf.mxu0
        %v1402 = vadd.f32 %v1366, %v1401
        %1403 = vdwg.mxu0
        %1404 = vmatpush.bf16.msra.mxu0 0
        %1405 = vmatpush.bf16.msra.mxu0 0
        %1406 = vmatpush.bf16.msra.mxu0 0
        %1407 = vmatpush.bf16.msra.mxu0 0
        %1408 = vmatpush.bf16.msra.mxu0 0
        %1409 = vmatpush.bf16.msra.mxu0 0
        %1410 = vmatpush.bf16.msra.mxu0 0
        %1411 = vmatpush.bf16.msra.mxu0 %v1343
        %1412 = vmatmul.bf16.gmra.mxu0 %v1380
        %v1413 = vpop.f32.mrf.mxu0
        %v1414 = vadd.f32 %v1351, %v1413
        %v1415 = vpop.f32.mrf.mxu0
        %v1416 = vadd.f32 %v1356, %v1415
        %1417 = vmatmul.bf16.gmra.mxu0 %v1383
        %v1418 = vpop.f32.mrf.mxu0
        %v1419 = vadd.f32 %v1361, %v1418
        %v1420 = vpop.f32.mrf.mxu0
        %v1421 = vadd.f32 %v1366, %v1420
        %1422 = vdwg.mxu0
        %s1423 = smul.addr %s560, 8
        %s1424 = scalar_lea.vmem %s260, %s1423
        %v1425 = vld [vmem:[%s1424] sm:$0xff]
        %v1426 = vld [vmem:[%s1424 + $0x8] sm:$0xff]
        %v1427 = vld [vmem:[%s1424 + $0x40] sm:$0xff]
        %v1428 = vld [vmem:[%s1424 + $0x48] sm:$0xff]
        %v1429 = vld [vmem:[%s1424 + $0x80] sm:$0xff]
        %v1430 = vld [vmem:[%s1424 + $0x88] sm:$0xff]
        %v1431 = vld [vmem:[%s1424 + $0xc0] sm:$0xff]
        %v1432 = vld [vmem:[%s1424 + $0xc8] sm:$0xff]
        %s1433 = sld [smem:[#allocation5]]
        %v1434 = vstv %s1433
        %v1435 = vmul.f32 %v1434, %v1395
        %v1436 = vmul.f32 %v1434, %v1414
        %v1437 = vmul.f32 %v1434, %v1397
        %v1438 = vmul.f32 %v1434, %v1416
        %v1439 = vmul.f32 %v1434, %v1400
        %v1440 = vmul.f32 %v1434, %v1419
        %v1441 = vmul.f32 %v1434, %v1402
        %v1442 = vmul.f32 %v1434, %v1421
        %v1443 = vadd.f32 %v1435, %v1425
        %v1444 = vadd.f32 %v1436, %v1426
        %v1445 = vadd.f32 %v1437, %v1427
        %v1446 = vadd.f32 %v1438, %v1428
        %v1447 = vadd.f32 %v1439, %v1429
        %v1448 = vadd.f32 %v1440, %v1430
        %v1449 = vadd.f32 %v1441, %v1431
        %v1450 = vadd.f32 %v1442, %v1432
        %1451 = vst [vmem:[%s255] sm:$0xff] %v1443
        %1452 = vst [vmem:[%s255 + $0x8] sm:$0xff] %v1444
        %1453 = vst [vmem:[%s255 + $0x10] sm:$0xff] %v1445
        %1454 = vst [vmem:[%s255 + $0x18] sm:$0xff] %v1446
        %1455 = vst [vmem:[%s255 + $0x20] sm:$0xff] %v1447
        %1456 = vst [vmem:[%s255 + $0x28] sm:$0xff] %v1448
        %1457 = vst [vmem:[%s255 + $0x30] sm:$0xff] %v1449
        %1458 = vst [vmem:[%s255 + $0x38] sm:$0xff] %v1450
        %s1459 = sand.u32 %s171, 1
        %s1460 = sand.u32 %s171, 1
        %s1461 = smul.addr %s1460, 64
        %s1462 = scalar_lea.vmem [#allocation6], %s1461
        // Predicated region
        $region49: #{self_attention_forward.1} parent=43 // pred_check
          %p1463 = pneg %p181
        $region50: #{self_attention_forward.1} parent=43 // pred_check_branch
          %1465 = sbr.rel (%p1463) target = $region52
        $region51: #{self_attention_forward.1} parent=43 // pred_region
          %s1466 = smul.u32 2, %s23
          %s1467 = smul.addr %s22, 32
          %s1468 = sadd.s32 %s1466, %s1467
          %s1469 = smul.addr %s1468, 8
          %s1470 = scalar_lea.vmem %s6, %s1469
          // Predicated region
          $region53: #{self_attention_forward.1} parent=51 // pred_check
            _
          $region54: #{self_attention_forward.1} parent=51 // pred_check_branch
            %1472 = sbr.rel (0) target = $region56
          $region55: #{self_attention_forward.1} parent=51 // pred_region
            // Predicated region
            $region57: #{self_attention_forward.1} parent=55 // pred_check
              _
            $region58: #{self_attention_forward.1} parent=55 // pred_check_branch
              %1474 = sbr.rel (0) target = $region60
            $region59: #{self_attention_forward.1} parent=55 // pred_region
              loop: start=0, step=1, limit=1
              $region61: #{self_attention_forward.1} parent=59 // loop_pre_header
                _
              $region62: #{self_attention_forward.1} parent=59 // loop_header
                %s1476 = sphi 0, %s1480
                %p1477 = scmp.ge.s32.totalorder %s1476, 1
                %s1481 = sphi %s1462, %s1462
                %s1482 = sphi %s1470, %s1470
              $region63: #{self_attention_forward.1} parent=59 // loop_header_branch
                %1479 = sbr.rel (%p1477) target = $region67
              $region64: #{self_attention_forward.1} parent=59 // loop_body
                %v1483 = vld [vmem:[%s1481] sm:$0xff]
                %1484 = vst [vmem:[%s1482] sm:$0xff] %v1483
                %v1485 = vld [vmem:[%s1481 + $0x8] sm:$0xff]
                %1486 = vst [vmem:[%s1482 + $0x8] sm:$0xff] %v1485
                %v1487 = vld [vmem:[%s1481 + $0x10] sm:$0xff]
                %1488 = vst [vmem:[%s1482 + $0x40] sm:$0xff] %v1487
                %v1489 = vld [vmem:[%s1481 + $0x18] sm:$0xff]
                %1490 = vst [vmem:[%s1482 + $0x48] sm:$0xff] %v1489
                %v1491 = vld [vmem:[%s1481 + $0x20] sm:$0xff]
                %1492 = vst [vmem:[%s1482 + $0x80] sm:$0xff] %v1491
                %v1493 = vld [vmem:[%s1481 + $0x28] sm:$0xff]
                %1494 = vst [vmem:[%s1482 + $0x88] sm:$0xff] %v1493
                %v1495 = vld [vmem:[%s1481 + $0x30] sm:$0xff]
                %1496 = vst [vmem:[%s1482 + $0xc0] sm:$0xff] %v1495
                %v1497 = vld [vmem:[%s1481 + $0x38] sm:$0xff]
                %1498 = vst [vmem:[%s1482 + $0xc8] sm:$0xff] %v1497
              $region65: #{self_attention_forward.1} parent=59 // loop_footer
                %s1480 = sadd.s32 1, %s1476
              $region66: #{self_attention_forward.1} parent=59 // loop_footer_branch
                %1475 = sbr.rel target = $region62
              $region67: #{self_attention_forward.1} parent=59 // loop_exit
                _
            $region60: #{self_attention_forward.1} parent=55 // pred_fallthru
              _
            // Predicated region
            $region68: #{self_attention_forward.1} parent=55 // pred_check
              _
            $region69: #{self_attention_forward.1} parent=55 // pred_check_branch
              %1500 = sbr.rel target = $region71
            $region70: #{self_attention_forward.1} parent=55 // pred_region
              _
            $region71: #{self_attention_forward.1} parent=55 // pred_fallthru
              _
          $region56: #{self_attention_forward.1} parent=51 // pred_fallthru
            _
          %1501 = vnop
        $region52: #{self_attention_forward.1} parent=43 // pred_fallthru
          _
      $region44: #{self_attention_forward.1} parent=5 // pred_fallthru
        _
      %p1502 = scmp.le.s32.totalorder 2, %s13
      // Predicated region
      $region72: #{self_attention_forward.1} parent=5 // pred_check
        %p1503 = pneg %p1502
      $region73: #{self_attention_forward.1} parent=5 // pred_check_branch
        %1505 = sbr.rel (%p1503) target = $region75
      $region74: #{self_attention_forward.1} parent=5 // pred_region
        %s1506 = ssub.s32 %s13, 2
        // Predicated region
        $region76: #{self_attention_forward.1} parent=74 // pred_check
          %p1507 = pneg %p187
        $region77: #{self_attention_forward.1} parent=74 // pred_check_branch
          %1509 = sbr.rel (%p1507) target = $region79
        $region78: #{self_attention_forward.1} parent=74 // pred_region
          %s1510 = sand.u32 %s172, 1
          %s1511 = sand.u32 %s172, 1
          %s1512 = smul.addr %s1511, 64
          %s1513 = scalar_lea.vmem [#allocation6], %s1512
        $region79: #{self_attention_forward.1} parent=74 // pred_fallthru
          _
      $region75: #{self_attention_forward.1} parent=5 // pred_fallthru
        _
    $region6: #{self_attention_forward.1} parent=1 // loop_footer
      %s17 = sadd.s32 1, %s13
    $region7: #{self_attention_forward.1} parent=1 // loop_footer_branch
      %12 = sbr.rel target = $region3
    $region8: #{self_attention_forward.1} parent=1 // loop_exit
      _

</llo_original>
